<compile_context>
chip_gen: v6e
topology: v6e:2x2x1
jax: 0.10.0
libtpu: 0.0.40
codegen_flags: <defaults>
</compile_context>

<pallas_src>
import functools

import jax
import jax.numpy as jnp
from jax.experimental import pallas as pl
from jax.experimental.pallas import tpu as pltpu


def _vmem_limit_bytes():
    """Per-generation VMEM budget (v5e/v6e: 128 MiB physical, v7x: 64 MiB)."""
    try:
        cap = int(pltpu.get_tpu_info().vmem_capacity_bytes)
    except Exception:
        cap = 64 << 20
    return max(16 << 20, min(cap // 2, 96 << 20))


def _glu_conv_kernel(x_ref, w_ref, b_ref, o_ref, *, tr, ow, oc, kh_f, kw_f):
    # x_ref: (1, HF, WF, CF)   bf16 space-to-depth folded image (resident per n)
    # w_ref: (taps, CF, 2*OC)  bf16 folded fused [w1 | w2] weights (resident)
    # b_ref: (1, 2*OC)         f32  fused [b1 | b2] bias (resident)
    # o_ref: (1, TR, OW, OC)   f32  gated output row tile
    row0 = pl.program_id(1) * tr

    # Hoist the (tiny) resident operands out of the unrolled row loop.
    w_taps = [w_ref[t] for t in range(kh_f * kw_f)]     # each (CF, 2*OC)
    bias = b_ref[...]                                    # (1, 2*OC)

    for rr in range(tr):                                 # static unroll, tr <= 8
        acc = jnp.zeros((ow, 2 * oc), jnp.float32)
        for fi in range(kh_f):
            for fj in range(kw_f):
                # Contiguous slice of the folded image: one tap's inputs for a
                # whole output row -> (OW, CF).  No strided / inflated reads.
                piece = x_ref[0, row0 + rr + fi, pl.ds(fj, ow), :]
                acc += jnp.dot(piece, w_taps[fi * kw_f + fj],
                               preferred_element_type=jnp.float32)
        acc = acc + bias
        gated = acc[:, :oc] * jax.nn.sigmoid(acc[:, oc:])
        o_ref[0, rr] = gated.astype(o_ref.dtype)


@functools.partial(jax.jit, static_argnames=("kernel_size", "stride"))
def glu_conv2d(x, w1, b1, w2, b2, *, kernel_size, stride):
    """x: (N, C_in, H, W) NCHW; w: (OC, IC, KH, KW); b: (OC,).  Returns NCHW f32."""
    n, c_in, h, w = x.shape
    oc = w1.shape[0]
    kh = kw = kernel_size
    s = stride
    oh = (h - kh) // s + 1
    ow = (w - kw) // s + 1
    assert oh > 0 and ow > 0

    # Space-to-depth fold: a stride-s k x k conv == stride-1 kh_f x kw_f conv on
    # the folded input (channels = s*s*C) with zero-padded "phantom" taps.
    kh_f = (kh - 1) // s + 1
    kw_f = (kw - 1) // s + 1
    taps = kh_f * kw_f
    cf = s * s * c_in

    # Row tiling: keep >= 2 row tiles whenever OH >= 2 so the grid always has
    # multiple steps (pipelining + v7x dual-TC sharding), cap the unroll at 8.
    tr = max(1, min(8, pl.cdiv(oh, 2)))
    r_tiles = pl.cdiv(oh, tr)

    # Pad H so the ragged last row tile never reads out of bounds (the extra
    # rows only feed output rows >= OH, which Pallas masks off on writeback).
    hf_pad = max(pl.cdiv(h, s), r_tiles * tr + kh_f - 1)
    wf = pl.cdiv(w, s)

    # NHWC view, bf16 activation stream, small pad of the *raw* input only.
    x_nhwc = jnp.transpose(x, (0, 2, 3, 1)).astype(jnp.bfloat16)
    x_nhwc = jnp.pad(x_nhwc, ((0, 0), (0, hf_pad * s - h), (0, wf * s - w), (0, 0)))
    x_fold = x_nhwc.reshape(n, hf_pad, s, wf, s, c_in)
    x_fold = jnp.transpose(x_fold, (0, 1, 3, 2, 4, 5)).reshape(n, hf_pad, wf, cf)

    def fold_w(wt):
        # (OC, IC, KH, KW) -> (taps, CF, OC); tap order (fi, fj), channel order
        # (pi, pj, ic) matching the fold above; positions past the real kernel
        # footprint get zero weight.
        wt = jnp.transpose(wt, (2, 3, 1, 0))                       # (KH, KW, IC, OC)
        wt = jnp.pad(wt, ((0, kh_f * s - kh), (0, kw_f * s - kw), (0, 0), (0, 0)))
        wt = wt.reshape(kh_f, s, kw_f, s, c_in, oc)
        wt = jnp.transpose(wt, (0, 2, 1, 3, 4, 5))
        return wt.reshape(taps, cf, oc)

    w_fused = jnp.concatenate([fold_w(w1), fold_w(w2)], axis=-1).astype(jnp.bfloat16)
    b_fused = jnp.concatenate([b1, b2]).astype(jnp.float32).reshape(1, 2 * oc)

    kernel = functools.partial(_glu_conv_kernel, tr=tr, ow=ow, oc=oc,
                               kh_f=kh_f, kw_f=kw_f)

    cost = pl.CostEstimate(
        flops=2 * n * oh * ow * taps * cf * (2 * oc),
        transcendentals=n * oh * ow * oc,
        bytes_accessed=(x_fold.size * 2 + w_fused.size * 2 + b_fused.size * 4
                        + n * oh * ow * oc * 4))

    out_nhwc = pl.pallas_call(
        kernel,
        out_shape=jax.ShapeDtypeStruct((n, oh, ow, oc), jnp.float32),
        grid=(n, r_tiles),
        in_specs=[
            # Full folded image per batch element; block index is constant in r
            # so it is copied to VMEM once per image and reused across row tiles.
            pl.BlockSpec((1, hf_pad, wf, cf), lambda i, r: (i, 0, 0, 0)),
            pl.BlockSpec((taps, cf, 2 * oc), lambda i, r: (0, 0, 0)),   # resident
            pl.BlockSpec((1, 2 * oc), lambda i, r: (0, 0)),             # resident
        ],
        out_specs=pl.BlockSpec((1, tr, ow, oc), lambda i, r: (i, r, 0, 0)),
        compiler_params=pltpu.CompilerParams(
            dimension_semantics=("parallel", "parallel"),
            vmem_limit_bytes=_vmem_limit_bytes(),
        ),
        cost_estimate=cost,
    )(x_fold, w_fused, b_fused)

    # TODO(synk): for large H*W*C the resident image should be replaced by a
    # manual halo DMA over row bands (make_async_copy / emit_pipeline), and for
    # large C_in*KH*KW / OC add K and OC grid axes with a VMEM f32 accumulator
    # (plus pl.Buffered(1) on the then-large resident weight strip) so the same
    # code path fits v7x's 64 MiB VMEM.
    # PyTorch semantics: NCHW f32 (the transpose runs on the exact-size output).
    return jnp.transpose(out_nhwc, (0, 3, 1, 2))


def _reference(x, w1, b1, w2, b2, stride, dtype=jnp.float32):
    xc = x.astype(dtype)
    dn = jax.lax.conv_dimension_numbers(x.shape, w1.shape, ("NCHW", "OIHW", "NCHW"))

    def conv(wt):
        return jax.lax.conv_general_dilated(
            xc, wt.astype(dtype), (stride, stride), "VALID",
            dimension_numbers=dn, preferred_element_type=jnp.float32)

    c1 = conv(w1) + b1[None, :, None, None]
    c2 = conv(w2) + b2[None, :, None, None]
    return c1 * jax.nn.sigmoid(c2)


if __name__ == "__main__":
    # Small shapes consistent with the module: N=2, C_in=4, H=W=16, OC=8, k=3, stride=2.
    N, C_IN, H, W = 2, 4, 16, 16
    OC, K, STRIDE = 8, 3, 2

    key = jax.random.PRNGKey(0)
    kx, k1, k2, k3, k4 = jax.random.split(key, 5)

    x = jax.random.normal(kx, (N, C_IN, H, W), dtype=jnp.float32)
    fan_in = C_IN * K * K
    scale = 1.0 / (fan_in ** 0.5)
    w1 = jax.random.uniform(k1, (OC, C_IN, K, K), minval=-scale, maxval=scale, dtype=jnp.float32)
    b1 = jax.random.uniform(k2, (OC,), minval=-scale, maxval=scale, dtype=jnp.float32)
    w2 = jax.random.uniform(k3, (OC, C_IN, K, K), minval=-scale, maxval=scale, dtype=jnp.float32)
    b2 = jax.random.uniform(k4, (OC,), minval=-scale, maxval=scale, dtype=jnp.float32)

    out = jax.block_until_ready(glu_conv2d(x, w1, b1, w2, b2, kernel_size=K, stride=STRIDE))

    OH = (H - K) // STRIDE + 1
    assert out.shape == (N, OC, OH, OH), out.shape

    # Apples-to-apples: reference with the same bf16 input/weight cast and f32
    # accumulation (only reduction-order differences remain).
    ref_bf16 = jax.block_until_ready(_reference(x, w1, b1, w2, b2, STRIDE, dtype=jnp.bfloat16))
    assert jnp.allclose(out, ref_bf16, atol=1e-3, rtol=1e-3), \
        float(jnp.max(jnp.abs(out - ref_bf16)))

    # Sanity vs the full-f32 reference (loose tolerance for bf16 rounding).
    ref_f32 = jax.block_until_ready(_reference(x, w1, b1, w2, b2, STRIDE, dtype=jnp.float32))
    assert jnp.allclose(out, ref_f32, atol=6e-2, rtol=6e-2), \
        float(jnp.max(jnp.abs(out - ref_f32)))

    print("KERNEL_OK")
</pallas_src>

<mosaic_0001>
module attributes {stable_mosaic.version = 11 : i64} {
  func.func @_glu_conv_kernel(%arg0: i32, %arg1: i32, %arg2: memref<1x9x8x16xbf16, #tpu.memory_space<vmem>>, %arg3: memref<4x16x16xbf16, #tpu.memory_space<vmem>>, %arg4: memref<1x16xf32, #tpu.memory_space<vmem>>, %arg5: memref<1x4x7x8xf32, #tpu.memory_space<vmem>>) attributes {dimension_semantics = [#tpu.dimension_semantics<parallel>, #tpu.dimension_semantics<parallel>], iteration_bounds = array<i64: 2, 2>, scalar_prefetch = 0 : i64, scratch_operands = 0 : i64, tpu.core_type = #tpu.core_type<tc>, window_params = [{transform_indices = @transform_0, window_bounds = array<i64: 1, 9, 8, 16>}, {pipeline_mode = #tpu.pipeline_mode<synchronous>, transform_indices = @transform_1, window_bounds = array<i64: 4, 16, 16>}, {pipeline_mode = #tpu.pipeline_mode<synchronous>, transform_indices = @transform_2, window_bounds = array<i64: 1, 16>}, {transform_indices = @transform_3, window_bounds = array<i64: 1, 4, 7, 8>}]} {
    %c4_i32 = arith.constant 4 : i32
    %0 = arith.muli %arg1, %c4_i32 : i32
    %c0 = arith.constant 0 : index
    %c0_0 = arith.constant 0 : index
    %c0_1 = arith.constant 0 : index
    %1 = vector.load %arg3[%c0, %c0_0, %c0_1] : memref<4x16x16xbf16, #tpu.memory_space<vmem>>, vector<1x16x16xbf16>
    %2 = vector.shape_cast %1 : vector<1x16x16xbf16> to vector<16x16xbf16>
    %c1 = arith.constant 1 : index
    %c0_2 = arith.constant 0 : index
    %c0_3 = arith.constant 0 : index
    %3 = vector.load %arg3[%c1, %c0_2, %c0_3] : memref<4x16x16xbf16, #tpu.memory_space<vmem>>, vector<1x16x16xbf16>
    %4 = vector.shape_cast %3 : vector<1x16x16xbf16> to vector<16x16xbf16>
    %c2 = arith.constant 2 : index
    %c0_4 = arith.constant 0 : index
    %c0_5 = arith.constant 0 : index
    %5 = vector.load %arg3[%c2, %c0_4, %c0_5] : memref<4x16x16xbf16, #tpu.memory_space<vmem>>, vector<1x16x16xbf16>
    %6 = vector.shape_cast %5 : vector<1x16x16xbf16> to vector<16x16xbf16>
    %c3 = arith.constant 3 : index
    %c0_6 = arith.constant 0 : index
    %c0_7 = arith.constant 0 : index
    %7 = vector.load %arg3[%c3, %c0_6, %c0_7] : memref<4x16x16xbf16, #tpu.memory_space<vmem>>, vector<1x16x16xbf16>
    %8 = vector.shape_cast %7 : vector<1x16x16xbf16> to vector<16x16xbf16>
    %c0_8 = arith.constant 0 : index
    %c0_9 = arith.constant 0 : index
    %9 = vector.load %arg4[%c0_8, %c0_9] : memref<1x16xf32, #tpu.memory_space<vmem>>, vector<1x16xf32>
    %cst = arith.constant 0.000000e+00 : f32
    %10 = vector.broadcast %cst : f32 to vector<7x16xf32>
    %c0_i32 = arith.constant 0 : i32
    %11 = arith.addi %0, %c0_i32 : i32
    %c0_i32_10 = arith.constant 0 : i32
    %12 = arith.addi %11, %c0_i32_10 : i32
    %c0_11 = arith.constant 0 : index
    %13 = arith.index_cast %12 : i32 to index
    %c0_12 = arith.constant 0 : index
    %c0_13 = arith.constant 0 : index
    %14 = vector.load %arg2[%c0_11, %13, %c0_12, %c0_13] : memref<1x9x8x16xbf16, #tpu.memory_space<vmem>>, vector<1x1x7x16xbf16>
    %15 = vector.shape_cast %14 : vector<1x1x7x16xbf16> to vector<7x16xbf16>
    %cst_14 = arith.constant dense<0.000000e+00> : vector<7x16xf32>
    %16 = tpu.matmul %15, %2, %cst_14 {dimension_numbers = #tpu.dot_dimension_numbers<[1], [0], [0], [1], [0, 0, 1, 1], [], []>} : vector<7x16xbf16>, vector<16x16xbf16>, vector<7x16xf32> -> vector<7x16xf32>
    %17 = arith.addf %10, %16 : vector<7x16xf32>
    %c0_i32_15 = arith.constant 0 : i32
    %18 = arith.addi %0, %c0_i32_15 : i32
    %c0_i32_16 = arith.constant 0 : i32
    %19 = arith.addi %18, %c0_i32_16 : i32
    %c0_17 = arith.constant 0 : index
    %20 = arith.index_cast %19 : i32 to index
    %c1_18 = arith.constant 1 : index
    %c0_19 = arith.constant 0 : index
    %21 = vector.load %arg2[%c0_17, %20, %c1_18, %c0_19] : memref<1x9x8x16xbf16, #tpu.memory_space<vmem>>, vector<1x1x7x16xbf16>
    %22 = vector.shape_cast %21 : vector<1x1x7x16xbf16> to vector<7x16xbf16>
    %cst_20 = arith.constant dense<0.000000e+00> : vector<7x16xf32>
    %23 = tpu.matmul %22, %4, %cst_20 {dimension_numbers = #tpu.dot_dimension_numbers<[1], [0], [0], [1], [0, 0, 1, 1], [], []>} : vector<7x16xbf16>, vector<16x16xbf16>, vector<7x16xf32> -> vector<7x16xf32>
    %24 = arith.addf %17, %23 : vector<7x16xf32>
    %c0_i32_21 = arith.constant 0 : i32
    %25 = arith.addi %0, %c0_i32_21 : i32
    %c1_i32 = arith.constant 1 : i32
    %26 = arith.addi %25, %c1_i32 : i32
    %c0_22 = arith.constant 0 : index
    %27 = arith.index_cast %26 : i32 to index
    %c0_23 = arith.constant 0 : index
    %c0_24 = arith.constant 0 : index
    %28 = vector.load %arg2[%c0_22, %27, %c0_23, %c0_24] : memref<1x9x8x16xbf16, #tpu.memory_space<vmem>>, vector<1x1x7x16xbf16>
    %29 = vector.shape_cast %28 : vector<1x1x7x16xbf16> to vector<7x16xbf16>
    %cst_25 = arith.constant dense<0.000000e+00> : vector<7x16xf32>
    %30 = tpu.matmul %29, %6, %cst_25 {dimension_numbers = #tpu.dot_dimension_numbers<[1], [0], [0], [1], [0, 0, 1, 1], [], []>} : vector<7x16xbf16>, vector<16x16xbf16>, vector<7x16xf32> -> vector<7x16xf32>
    %31 = arith.addf %24, %30 : vector<7x16xf32>
    %c0_i32_26 = arith.constant 0 : i32
    %32 = arith.addi %0, %c0_i32_26 : i32
    %c1_i32_27 = arith.constant 1 : i32
    %33 = arith.addi %32, %c1_i32_27 : i32
    %c0_28 = arith.constant 0 : index
    %34 = arith.index_cast %33 : i32 to index
    %c1_29 = arith.constant 1 : index
    %c0_30 = arith.constant 0 : index
    %35 = vector.load %arg2[%c0_28, %34, %c1_29, %c0_30] : memref<1x9x8x16xbf16, #tpu.memory_space<vmem>>, vector<1x1x7x16xbf16>
    %36 = vector.shape_cast %35 : vector<1x1x7x16xbf16> to vector<7x16xbf16>
    %cst_31 = arith.constant dense<0.000000e+00> : vector<7x16xf32>
    %37 = tpu.matmul %36, %8, %cst_31 {dimension_numbers = #tpu.dot_dimension_numbers<[1], [0], [0], [1], [0, 0, 1, 1], [], []>} : vector<7x16xbf16>, vector<16x16xbf16>, vector<7x16xf32> -> vector<7x16xf32>
    %38 = arith.addf %31, %37 : vector<7x16xf32>
    %39 = vector.broadcast %9 : vector<1x16xf32> to vector<7x16xf32>
    %40 = arith.addf %38, %39 : vector<7x16xf32>
    %41 = vector.extract_strided_slice %40 {offsets = [0, 0], sizes = [7, 8], strides = [1, 1]} : vector<7x16xf32> to vector<7x8xf32>
    %42 = vector.extract_strided_slice %40 {offsets = [0, 8], sizes = [7, 8], strides = [1, 1]} : vector<7x16xf32> to vector<7x8xf32>
    %43 = arith.negf %42 : vector<7x8xf32>
    %44 = math.exp %43 : vector<7x8xf32>
    %cst_32 = arith.constant 1.000000e+00 : f32
    %45 = vector.broadcast %cst_32 : f32 to vector<7x8xf32>
    %46 = arith.addf %45, %44 : vector<7x8xf32>
    %47 = arith.divf %45, %46 : vector<7x8xf32>
    %48 = arith.mulf %41, %47 : vector<7x8xf32>
    %c0_33 = arith.constant 0 : index
    %c0_34 = arith.constant 0 : index
    %c0_35 = arith.constant 0 : index
    %c0_36 = arith.constant 0 : index
    %49 = vector.load %arg5[%c0_33, %c0_34, %c0_35, %c0_36] : memref<1x4x7x8xf32, #tpu.memory_space<vmem>>, vector<1x1x7x8xf32>
    %50 = vector.shape_cast %49 : vector<1x1x7x8xf32> to vector<7x8xf32>
    %51 = vector.shape_cast %48 : vector<7x8xf32> to vector<1x1x7x8xf32>
    tpu.vector_store %arg5[%c0_33, %c0_34, %c0_35, %c0_36], %51 {strides = array<i32>} : memref<1x4x7x8xf32, #tpu.memory_space<vmem>>, vector<1x1x7x8xf32>,
    %cst_37 = arith.constant 0.000000e+00 : f32
    %52 = vector.broadcast %cst_37 : f32 to vector<7x16xf32>
    %c1_i32_38 = arith.constant 1 : i32
    %53 = arith.addi %0, %c1_i32_38 : i32
    %c0_i32_39 = arith.constant 0 : i32
    %54 = arith.addi %53, %c0_i32_39 : i32
    %c0_40 = arith.constant 0 : index
    %55 = arith.index_cast %54 : i32 to index
    %c0_41 = arith.constant 0 : index
    %c0_42 = arith.constant 0 : index
    %56 = vector.load %arg2[%c0_40, %55, %c0_41, %c0_42] : memref<1x9x8x16xbf16, #tpu.memory_space<vmem>>, vector<1x1x7x16xbf16>
    %57 = vector.shape_cast %56 : vector<1x1x7x16xbf16> to vector<7x16xbf16>
    %cst_43 = arith.constant dense<0.000000e+00> : vector<7x16xf32>
    %58 = tpu.matmul %57, %2, %cst_43 {dimension_numbers = #tpu.dot_dimension_numbers<[1], [0], [0], [1], [0, 0, 1, 1], [], []>} : vector<7x16xbf16>, vector<16x16xbf16>, vector<7x16xf32> -> vector<7x16xf32>
    %59 = arith.addf %52, %58 : vector<7x16xf32>
    %c1_i32_44 = arith.constant 1 : i32
    %60 = arith.addi %0, %c1_i32_44 : i32
    %c0_i32_45 = arith.constant 0 : i32
    %61 = arith.addi %60, %c0_i32_45 : i32
    %c0_46 = arith.constant 0 : index
    %62 = arith.index_cast %61 : i32 to index
    %c1_47 = arith.constant 1 : index
    %c0_48 = arith.constant 0 : index
    %63 = vector.load %arg2[%c0_46, %62, %c1_47, %c0_48] : memref<1x9x8x16xbf16, #tpu.memory_space<vmem>>, vector<1x1x7x16xbf16>
    %64 = vector.shape_cast %63 : vector<1x1x7x16xbf16> to vector<7x16xbf16>
    %cst_49 = arith.constant dense<0.000000e+00> : vector<7x16xf32>
    %65 = tpu.matmul %64, %4, %cst_49 {dimension_numbers = #tpu.dot_dimension_numbers<[1], [0], [0], [1], [0, 0, 1, 1], [], []>} : vector<7x16xbf16>, vector<16x16xbf16>, vector<7x16xf32> -> vector<7x16xf32>
    %66 = arith.addf %59, %65 : vector<7x16xf32>
    %c1_i32_50 = arith.constant 1 : i32
    %67 = arith.addi %0, %c1_i32_50 : i32
    %c1_i32_51 = arith.constant 1 : i32
    %68 = arith.addi %67, %c1_i32_51 : i32
    %c0_52 = arith.constant 0 : index
    %69 = arith.index_cast %68 : i32 to index
    %c0_53 = arith.constant 0 : index
    %c0_54 = arith.constant 0 : index
    %70 = vector.load %arg2[%c0_52, %69, %c0_53, %c0_54] : memref<1x9x8x16xbf16, #tpu.memory_space<vmem>>, vector<1x1x7x16xbf16>
    %71 = vector.shape_cast %70 : vector<1x1x7x16xbf16> to vector<7x16xbf16>
    %cst_55 = arith.constant dense<0.000000e+00> : vector<7x16xf32>
    %72 = tpu.matmul %71, %6, %cst_55 {dimension_numbers = #tpu.dot_dimension_numbers<[1], [0], [0], [1], [0, 0, 1, 1], [], []>} : vector<7x16xbf16>, vector<16x16xbf16>, vector<7x16xf32> -> vector<7x16xf32>
    %73 = arith.addf %66, %72 : vector<7x16xf32>
    %c1_i32_56 = arith.constant 1 : i32
    %74 = arith.addi %0, %c1_i32_56 : i32
    %c1_i32_57 = arith.constant 1 : i32
    %75 = arith.addi %74, %c1_i32_57 : i32
    %c0_58 = arith.constant 0 : index
    %76 = arith.index_cast %75 : i32 to index
    %c1_59 = arith.constant 1 : index
    %c0_60 = arith.constant 0 : index
    %77 = vector.load %arg2[%c0_58, %76, %c1_59, %c0_60] : memref<1x9x8x16xbf16, #tpu.memory_space<vmem>>, vector<1x1x7x16xbf16>
    %78 = vector.shape_cast %77 : vector<1x1x7x16xbf16> to vector<7x16xbf16>
    %cst_61 = arith.constant dense<0.000000e+00> : vector<7x16xf32>
    %79 = tpu.matmul %78, %8, %cst_61 {dimension_numbers = #tpu.dot_dimension_numbers<[1], [0], [0], [1], [0, 0, 1, 1], [], []>} : vector<7x16xbf16>, vector<16x16xbf16>, vector<7x16xf32> -> vector<7x16xf32>
    %80 = arith.addf %73, %79 : vector<7x16xf32>
    %81 = vector.broadcast %9 : vector<1x16xf32> to vector<7x16xf32>
    %82 = arith.addf %80, %81 : vector<7x16xf32>
    %83 = vector.extract_strided_slice %82 {offsets = [0, 0], sizes = [7, 8], strides = [1, 1]} : vector<7x16xf32> to vector<7x8xf32>
    %84 = vector.extract_strided_slice %82 {offsets = [0, 8], sizes = [7, 8], strides = [1, 1]} : vector<7x16xf32> to vector<7x8xf32>
    %85 = arith.negf %84 : vector<7x8xf32>
    %86 = math.exp %85 : vector<7x8xf32>
    %cst_62 = arith.constant 1.000000e+00 : f32
    %87 = vector.broadcast %cst_62 : f32 to vector<7x8xf32>
    %88 = arith.addf %87, %86 : vector<7x8xf32>
    %89 = arith.divf %87, %88 : vector<7x8xf32>
    %90 = arith.mulf %83, %89 : vector<7x8xf32>
    %c0_63 = arith.constant 0 : index
    %c1_64 = arith.constant 1 : index
    %c0_65 = arith.constant 0 : index
    %c0_66 = arith.constant 0 : index
    %91 = vector.load %arg5[%c0_63, %c1_64, %c0_65, %c0_66] : memref<1x4x7x8xf32, #tpu.memory_space<vmem>>, vector<1x1x7x8xf32>
    %92 = vector.shape_cast %91 : vector<1x1x7x8xf32> to vector<7x8xf32>
    %93 = vector.shape_cast %90 : vector<7x8xf32> to vector<1x1x7x8xf32>
    tpu.vector_store %arg5[%c0_63, %c1_64, %c0_65, %c0_66], %93 {strides = array<i32>} : memref<1x4x7x8xf32, #tpu.memory_space<vmem>>, vector<1x1x7x8xf32>,
    %cst_67 = arith.constant 0.000000e+00 : f32
    %94 = vector.broadcast %cst_67 : f32 to vector<7x16xf32>
    %c2_i32 = arith.constant 2 : i32
    %95 = arith.addi %0, %c2_i32 : i32
    %c0_i32_68 = arith.constant 0 : i32
    %96 = arith.addi %95, %c0_i32_68 : i32
    %c0_69 = arith.constant 0 : index
    %97 = arith.index_cast %96 : i32 to index
    %c0_70 = arith.constant 0 : index
    %c0_71 = arith.constant 0 : index
    %98 = vector.load %arg2[%c0_69, %97, %c0_70, %c0_71] : memref<1x9x8x16xbf16, #tpu.memory_space<vmem>>, vector<1x1x7x16xbf16>
    %99 = vector.shape_cast %98 : vector<1x1x7x16xbf16> to vector<7x16xbf16>
    %cst_72 = arith.constant dense<0.000000e+00> : vector<7x16xf32>
    %100 = tpu.matmul %99, %2, %cst_72 {dimension_numbers = #tpu.dot_dimension_numbers<[1], [0], [0], [1], [0, 0, 1, 1], [], []>} : vector<7x16xbf16>, vector<16x16xbf16>, vector<7x16xf32> -> vector<7x16xf32>
    %101 = arith.addf %94, %100 : vector<7x16xf32>
    %c2_i32_73 = arith.constant 2 : i32
    %102 = arith.addi %0, %c2_i32_73 : i32
    %c0_i32_74 = arith.constant 0 : i32
    %103 = arith.addi %102, %c0_i32_74 : i32
    %c0_75 = arith.constant 0 : index
    %104 = arith.index_cast %103 : i32 to index
    %c1_76 = arith.constant 1 : index
    %c0_77 = arith.constant 0 : index
    %105 = vector.load %arg2[%c0_75, %104, %c1_76, %c0_77] : memref<1x9x8x16xbf16, #tpu.memory_space<vmem>>, vector<1x1x7x16xbf16>
    %106 = vector.shape_cast %105 : vector<1x1x7x16xbf16> to vector<7x16xbf16>
    %cst_78 = arith.constant dense<0.000000e+00> : vector<7x16xf32>
    %107 = tpu.matmul %106, %4, %cst_78 {dimension_numbers = #tpu.dot_dimension_numbers<[1], [0], [0], [1], [0, 0, 1, 1], [], []>} : vector<7x16xbf16>, vector<16x16xbf16>, vector<7x16xf32> -> vector<7x16xf32>
    %108 = arith.addf %101, %107 : vector<7x16xf32>
    %c2_i32_79 = arith.constant 2 : i32
    %109 = arith.addi %0, %c2_i32_79 : i32
    %c1_i32_80 = arith.constant 1 : i32
    %110 = arith.addi %109, %c1_i32_80 : i32
    %c0_81 = arith.constant 0 : index
    %111 = arith.index_cast %110 : i32 to index
    %c0_82 = arith.constant 0 : index
    %c0_83 = arith.constant 0 : index
    %112 = vector.load %arg2[%c0_81, %111, %c0_82, %c0_83] : memref<1x9x8x16xbf16, #tpu.memory_space<vmem>>, vector<1x1x7x16xbf16>
    %113 = vector.shape_cast %112 : vector<1x1x7x16xbf16> to vector<7x16xbf16>
    %cst_84 = arith.constant dense<0.000000e+00> : vector<7x16xf32>
    %114 = tpu.matmul %113, %6, %cst_84 {dimension_numbers = #tpu.dot_dimension_numbers<[1], [0], [0], [1], [0, 0, 1, 1], [], []>} : vector<7x16xbf16>, vector<16x16xbf16>, vector<7x16xf32> -> vector<7x16xf32>
    %115 = arith.addf %108, %114 : vector<7x16xf32>
    %c2_i32_85 = arith.constant 2 : i32
    %116 = arith.addi %0, %c2_i32_85 : i32
    %c1_i32_86 = arith.constant 1 : i32
    %117 = arith.addi %116, %c1_i32_86 : i32
    %c0_87 = arith.constant 0 : index
    %118 = arith.index_cast %117 : i32 to index
    %c1_88 = arith.constant 1 : index
    %c0_89 = arith.constant 0 : index
    %119 = vector.load %arg2[%c0_87, %118, %c1_88, %c0_89] : memref<1x9x8x16xbf16, #tpu.memory_space<vmem>>, vector<1x1x7x16xbf16>
    %120 = vector.shape_cast %119 : vector<1x1x7x16xbf16> to vector<7x16xbf16>
    %cst_90 = arith.constant dense<0.000000e+00> : vector<7x16xf32>
    %121 = tpu.matmul %120, %8, %cst_90 {dimension_numbers = #tpu.dot_dimension_numbers<[1], [0], [0], [1], [0, 0, 1, 1], [], []>} : vector<7x16xbf16>, vector<16x16xbf16>, vector<7x16xf32> -> vector<7x16xf32>
    %122 = arith.addf %115, %121 : vector<7x16xf32>
    %123 = vector.broadcast %9 : vector<1x16xf32> to vector<7x16xf32>
    %124 = arith.addf %122, %123 : vector<7x16xf32>
    %125 = vector.extract_strided_slice %124 {offsets = [0, 0], sizes = [7, 8], strides = [1, 1]} : vector<7x16xf32> to vector<7x8xf32>
    %126 = vector.extract_strided_slice %124 {offsets = [0, 8], sizes = [7, 8], strides = [1, 1]} : vector<7x16xf32> to vector<7x8xf32>
    %127 = arith.negf %126 : vector<7x8xf32>
    %128 = math.exp %127 : vector<7x8xf32>
    %cst_91 = arith.constant 1.000000e+00 : f32
    %129 = vector.broadcast %cst_91 : f32 to vector<7x8xf32>
    %130 = arith.addf %129, %128 : vector<7x8xf32>
    %131 = arith.divf %129, %130 : vector<7x8xf32>
    %132 = arith.mulf %125, %131 : vector<7x8xf32>
    %c0_92 = arith.constant 0 : index
    %c2_93 = arith.constant 2 : index
    %c0_94 = arith.constant 0 : index
    %c0_95 = arith.constant 0 : index
    %133 = vector.load %arg5[%c0_92, %c2_93, %c0_94, %c0_95] : memref<1x4x7x8xf32, #tpu.memory_space<vmem>>, vector<1x1x7x8xf32>
    %134 = vector.shape_cast %133 : vector<1x1x7x8xf32> to vector<7x8xf32>
    %135 = vector.shape_cast %132 : vector<7x8xf32> to vector<1x1x7x8xf32>
    tpu.vector_store %arg5[%c0_92, %c2_93, %c0_94, %c0_95], %135 {strides = array<i32>} : memref<1x4x7x8xf32, #tpu.memory_space<vmem>>, vector<1x1x7x8xf32>,
    %cst_96 = arith.constant 0.000000e+00 : f32
    %136 = vector.broadcast %cst_96 : f32 to vector<7x16xf32>
    %c3_i32 = arith.constant 3 : i32
    %137 = arith.addi %0, %c3_i32 : i32
    %c0_i32_97 = arith.constant 0 : i32
    %138 = arith.addi %137, %c0_i32_97 : i32
    %c0_98 = arith.constant 0 : index
    %139 = arith.index_cast %138 : i32 to index
    %c0_99 = arith.constant 0 : index
    %c0_100 = arith.constant 0 : index
    %140 = vector.load %arg2[%c0_98, %139, %c0_99, %c0_100] : memref<1x9x8x16xbf16, #tpu.memory_space<vmem>>, vector<1x1x7x16xbf16>
    %141 = vector.shape_cast %140 : vector<1x1x7x16xbf16> to vector<7x16xbf16>
    %cst_101 = arith.constant dense<0.000000e+00> : vector<7x16xf32>
    %142 = tpu.matmul %141, %2, %cst_101 {dimension_numbers = #tpu.dot_dimension_numbers<[1], [0], [0], [1], [0, 0, 1, 1], [], []>} : vector<7x16xbf16>, vector<16x16xbf16>, vector<7x16xf32> -> vector<7x16xf32>
    %143 = arith.addf %136, %142 : vector<7x16xf32>
    %c3_i32_102 = arith.constant 3 : i32
    %144 = arith.addi %0, %c3_i32_102 : i32
    %c0_i32_103 = arith.constant 0 : i32
    %145 = arith.addi %144, %c0_i32_103 : i32
    %c0_104 = arith.constant 0 : index
    %146 = arith.index_cast %145 : i32 to index
    %c1_105 = arith.constant 1 : index
    %c0_106 = arith.constant 0 : index
    %147 = vector.load %arg2[%c0_104, %146, %c1_105, %c0_106] : memref<1x9x8x16xbf16, #tpu.memory_space<vmem>>, vector<1x1x7x16xbf16>
    %148 = vector.shape_cast %147 : vector<1x1x7x16xbf16> to vector<7x16xbf16>
    %cst_107 = arith.constant dense<0.000000e+00> : vector<7x16xf32>
    %149 = tpu.matmul %148, %4, %cst_107 {dimension_numbers = #tpu.dot_dimension_numbers<[1], [0], [0], [1], [0, 0, 1, 1], [], []>} : vector<7x16xbf16>, vector<16x16xbf16>, vector<7x16xf32> -> vector<7x16xf32>
    %150 = arith.addf %143, %149 : vector<7x16xf32>
    %c3_i32_108 = arith.constant 3 : i32
    %151 = arith.addi %0, %c3_i32_108 : i32
    %c1_i32_109 = arith.constant 1 : i32
    %152 = arith.addi %151, %c1_i32_109 : i32
    %c0_110 = arith.constant 0 : index
    %153 = arith.index_cast %152 : i32 to index
    %c0_111 = arith.constant 0 : index
    %c0_112 = arith.constant 0 : index
    %154 = vector.load %arg2[%c0_110, %153, %c0_111, %c0_112] : memref<1x9x8x16xbf16, #tpu.memory_space<vmem>>, vector<1x1x7x16xbf16>
    %155 = vector.shape_cast %154 : vector<1x1x7x16xbf16> to vector<7x16xbf16>
    %cst_113 = arith.constant dense<0.000000e+00> : vector<7x16xf32>
    %156 = tpu.matmul %155, %6, %cst_113 {dimension_numbers = #tpu.dot_dimension_numbers<[1], [0], [0], [1], [0, 0, 1, 1], [], []>} : vector<7x16xbf16>, vector<16x16xbf16>, vector<7x16xf32> -> vector<7x16xf32>
    %157 = arith.addf %150, %156 : vector<7x16xf32>
    %c3_i32_114 = arith.constant 3 : i32
    %158 = arith.addi %0, %c3_i32_114 : i32
    %c1_i32_115 = arith.constant 1 : i32
    %159 = arith.addi %158, %c1_i32_115 : i32
    %c0_116 = arith.constant 0 : index
    %160 = arith.index_cast %159 : i32 to index
    %c1_117 = arith.constant 1 : index
    %c0_118 = arith.constant 0 : index
    %161 = vector.load %arg2[%c0_116, %160, %c1_117, %c0_118] : memref<1x9x8x16xbf16, #tpu.memory_space<vmem>>, vector<1x1x7x16xbf16>
    %162 = vector.shape_cast %161 : vector<1x1x7x16xbf16> to vector<7x16xbf16>
    %cst_119 = arith.constant dense<0.000000e+00> : vector<7x16xf32>
    %163 = tpu.matmul %162, %8, %cst_119 {dimension_numbers = #tpu.dot_dimension_numbers<[1], [0], [0], [1], [0, 0, 1, 1], [], []>} : vector<7x16xbf16>, vector<16x16xbf16>, vector<7x16xf32> -> vector<7x16xf32>
    %164 = arith.addf %157, %163 : vector<7x16xf32>
    %165 = vector.broadcast %9 : vector<1x16xf32> to vector<7x16xf32>
    %166 = arith.addf %164, %165 : vector<7x16xf32>
    %167 = vector.extract_strided_slice %166 {offsets = [0, 0], sizes = [7, 8], strides = [1, 1]} : vector<7x16xf32> to vector<7x8xf32>
    %168 = vector.extract_strided_slice %166 {offsets = [0, 8], sizes = [7, 8], strides = [1, 1]} : vector<7x16xf32> to vector<7x8xf32>
    %169 = arith.negf %168 : vector<7x8xf32>
    %170 = math.exp %169 : vector<7x8xf32>
    %cst_120 = arith.constant 1.000000e+00 : f32
    %171 = vector.broadcast %cst_120 : f32 to vector<7x8xf32>
    %172 = arith.addf %171, %170 : vector<7x8xf32>
    %173 = arith.divf %171, %172 : vector<7x8xf32>
    %174 = arith.mulf %167, %173 : vector<7x8xf32>
    %c0_121 = arith.constant 0 : index
    %c3_122 = arith.constant 3 : index
    %c0_123 = arith.constant 0 : index
    %c0_124 = arith.constant 0 : index
    %175 = vector.load %arg5[%c0_121, %c3_122, %c0_123, %c0_124] : memref<1x4x7x8xf32, #tpu.memory_space<vmem>>, vector<1x1x7x8xf32>
    %176 = vector.shape_cast %175 : vector<1x1x7x8xf32> to vector<7x8xf32>
    %177 = vector.shape_cast %174 : vector<7x8xf32> to vector<1x1x7x8xf32>
    tpu.vector_store %arg5[%c0_121, %c3_122, %c0_123, %c0_124], %177 {strides = array<i32>} : memref<1x4x7x8xf32, #tpu.memory_space<vmem>>, vector<1x1x7x8xf32>,
    return
  }
  func.func @transform_0(%arg0: i32, %arg1: i32) -> (i32, i32, i32, i32) {
    %c0_i32 = arith.constant 0 : i32
    %c0_i32_0 = arith.constant 0 : i32
    %c0_i32_1 = arith.constant 0 : i32
    %c0_i32_2 = arith.constant 0 : i32
    return %arg0, %c0_i32, %c0_i32_0, %c0_i32_1 : i32, i32, i32, i32
  }
  func.func @transform_1(%arg0: i32, %arg1: i32) -> (i32, i32, i32) {
    %c0_i32 = arith.constant 0 : i32
    %c0_i32_0 = arith.constant 0 : i32
    %c0_i32_1 = arith.constant 0 : i32
    %c0_i32_2 = arith.constant 0 : i32
    return %c0_i32, %c0_i32_0, %c0_i32_1 : i32, i32, i32
  }
  func.func @transform_2(%arg0: i32, %arg1: i32) -> (i32, i32) {
    %c0_i32 = arith.constant 0 : i32
    %c0_i32_0 = arith.constant 0 : i32
    %c0_i32_1 = arith.constant 0 : i32
    return %c0_i32, %c0_i32_0 : i32, i32
  }
  func.func @transform_3(%arg0: i32, %arg1: i32) -> (i32, i32, i32, i32) {
    %c0_i32 = arith.constant 0 : i32
    %c0_i32_0 = arith.constant 0 : i32
    %c0_i32_1 = arith.constant 0 : i32
    return %arg0, %arg1, %c0_i32, %c0_i32_0 : i32, i32, i32, i32
  }
}

</mosaic_0001>

<llo_original>
// kernel: glu_conv2d.1
$region0: #{glu_conv2d.1}
  #allocation0 [shape = 'u32[]', space=smem, size = 0x4, offset = 0x4, fixed_abs, tag = 'smem constant byte address 0x4 - core index']
  #allocation1 [shape = 'u32[144,128]{1,0:T(1,128)}', space=vmem, size = 0x12000, scoped, tag = 'internal scratch']
  %s0 = inlined_call_operand.vmem [shape: bf16[2,9,8,16], index: 0, kind: input, shape index: {}]
  %s1 = inlined_call_operand.vmem [shape: bf16[4,16,16], index: 1, kind: input, shape index: {}]
  %s2 = inlined_call_operand.vmem [shape: f32[1,16], index: 2, kind: input, shape index: {}]
  %s3 = inlined_call_operand.vmem [shape: f32[2,7,7,8], index: 3, kind: output, shape index: {}]
  %s4 = sld [smem:[#allocation0]]
  $region93: #{glu_conv2d.1} parent=0
    _
  %s6 = ssub.s32 1, %s4
  %s7 = scalar_select 0, %s6, %s4
  $region1: #{glu_conv2d.1} parent=0
    #allocation2 [shape = 'u8[32768]{0}', space=vmem, size = 0x8000, scoped, tag = 'output window, operand 0']
    loop: start=0, step=1, limit=6
    $region2: #{glu_conv2d.1} parent=1 // loop_pre_header
      _
    $region3: #{glu_conv2d.1} parent=1 // loop_header
      %s9 = sphi 0, %s13
      %p10 = scmp.ge.s32.totalorder %s9, 6
      %s16 = sphi 0, %s28
      %s17 = sphi 0, %s24
      %s18 = sphi 0, %s16
      %s19 = sphi 0, %s17
      %s20 = sphi 0, %s18
      %s21 = sphi 0, %s19
      %s31 = sphi 0, %s33
      %s34 = sphi 0, %s31
      %s35 = sphi 0, %s34
      %s51 = sphi 0, %s35
      %s55 = sphi 0, %s55
      %s57 = sphi 0, %s55
      %s58 = sphi 0, %s57
      %s72 = sphi 0, %s58
      %s76 = sphi 0, %s76
      %s78 = sphi 0, %s76
      %s79 = sphi 0, %s78
      %s93 = sphi 0, %s79
      %s101 = sphi 0, %s103
      %s104 = sphi 0, %s101
      %s105 = sphi 0, %s104
      %s121 = sphi 0, %s105
    $region4: #{glu_conv2d.1} parent=1 // loop_header_branch
      %12 = sbr.rel (%p10) target = $region8
    $region5: #{glu_conv2d.1} parent=1 // loop_body
      %s14 = ssub.s32 %s9, 1
      %s15 = ssub.s32 %s9, 2
      %s22 = sadd.s32 1, %s17
      %p23 = scmp.ge.s32.totalorder %s22, 2
      %s24 = scalar_select %p23, 0, %s22
      %s25 = sadd.s32 1, %s16
      %s26 = scalar_select %p23, %s25, %s16
      %p27 = scmp.ge.s32.totalorder %s26, 2
      %s28 = scalar_select %p27, 0, %s26
      %s29 = ssub.s32 %s16, %s28
      %p30 = scmp.eq.s32.totalorder %s29, 0
      %s32 = sadd.s32 %s31, 1
      %s33 = scalar_select %p30, %s31, %s32
      %p36 = pneg %p30
      %p37 = scmp.eq.s32.totalorder %s9, 3
      %p38 = por %p36, %p37
      %p39 = scmp.ne.s32.totalorder %s31, %s34
      %p40 = scmp.eq.s32.totalorder %s9, 0
      %p41 = por %p39, %p40
      %p42 = scmp.ne.s32.totalorder %s31, %s34
      %p43 = scmp.eq.s32.totalorder %s14, 3
      %p44 = por %p42, %p43
      %p45 = scmp.ne.s32.totalorder %s34, %s35
      %p46 = scmp.eq.s32.totalorder %s14, 0
      %p47 = por %p45, %p46
      %p48 = scmp.ne.s32.totalorder %s34, %s35
      %p49 = scmp.eq.s32.totalorder %s15, 3
      %p50 = por %p48, %p49
      %p52 = scmp.ne.s32.totalorder %s35, %s51
      %p53 = scmp.eq.s32.totalorder %s15, 0
      %p54 = por %p52, %p53
      %s56 = sadd.s32 %s55, 1
      %p59 = scmp.eq.s32.totalorder %s9, 3
      %p60 = scmp.ne.s32.totalorder %s55, %s57
      %p61 = scmp.eq.s32.totalorder %s9, 0
      %p62 = por %p60, %p61
      %p63 = scmp.ne.s32.totalorder %s55, %s57
      %p64 = scmp.eq.s32.totalorder %s14, 3
      %p65 = por %p63, %p64
      %p66 = scmp.ne.s32.totalorder %s57, %s58
      %p67 = scmp.eq.s32.totalorder %s14, 0
      %p68 = por %p66, %p67
      %p69 = scmp.ne.s32.totalorder %s57, %s58
      %p70 = scmp.eq.s32.totalorder %s15, 3
      %p71 = por %p69, %p70
      %p73 = scmp.ne.s32.totalorder %s58, %s72
      %p74 = scmp.eq.s32.totalorder %s15, 0
      %p75 = por %p73, %p74
      %s77 = sadd.s32 %s76, 1
      %p80 = scmp.eq.s32.totalorder %s9, 3
      %p81 = scmp.ne.s32.totalorder %s76, %s78
      %p82 = scmp.eq.s32.totalorder %s9, 0
      %p83 = por %p81, %p82
      %p84 = scmp.ne.s32.totalorder %s76, %s78
      %p85 = scmp.eq.s32.totalorder %s14, 3
      %p86 = por %p84, %p85
      %p87 = scmp.ne.s32.totalorder %s78, %s79
      %p88 = scmp.eq.s32.totalorder %s14, 0
      %p89 = por %p87, %p88
      %p90 = scmp.ne.s32.totalorder %s78, %s79
      %p91 = scmp.eq.s32.totalorder %s15, 3
      %p92 = por %p90, %p91
      %p94 = scmp.ne.s32.totalorder %s79, %s93
      %p95 = scmp.eq.s32.totalorder %s15, 0
      %p96 = por %p94, %p95
      %s97 = ssub.s32 %s16, %s28
      %s98 = ssub.s32 %s17, %s24
      %s99 = sor.u32 %s97, %s98
      %p100 = scmp.eq.s32.totalorder %s99, 0
      %s102 = sadd.s32 %s101, 1
      %s103 = scalar_select %p100, %s101, %s102
      %p106 = pneg %p100
      %p107 = scmp.eq.s32.totalorder %s9, 3
      %p108 = por %p106, %p107
      %p109 = scmp.ne.s32.totalorder %s101, %s104
      %p110 = scmp.eq.s32.totalorder %s9, 0
      %p111 = por %p109, %p110
      %p112 = scmp.ne.s32.totalorder %s101, %s104
      %p113 = scmp.eq.s32.totalorder %s14, 3
      %p114 = por %p112, %p113
      %p115 = scmp.ne.s32.totalorder %s104, %s105
      %p116 = scmp.eq.s32.totalorder %s14, 0
      %p117 = por %p115, %p116
      %p118 = scmp.ne.s32.totalorder %s104, %s105
      %p119 = scmp.eq.s32.totalorder %s15, 3
      %p120 = por %p118, %p119
      %p122 = scmp.ne.s32.totalorder %s105, %s121
      %p123 = scmp.eq.s32.totalorder %s15, 0
      %p124 = por %p122, %p123
      %p125 = scmp.le.s32.totalorder 1, %s9
      %p126 = scmp.lt.s32.totalorder %s9, 5
      %p127 = pnand %p125, %p126
      %p128 = pneg %p127
      // Predicated region
      $region9: #{glu_conv2d.1} parent=5 // pred_check
        _
      $region10: #{glu_conv2d.1} parent=5 // pred_check_branch
        %130 = sbr.rel (%p127) target = $region12
      $region11: #{glu_conv2d.1} parent=5 // pred_region
        %s131 = ssub.s32 %s9, 1
        // Predicated region
        $region13: #{glu_conv2d.1} parent=11 // pred_check
          %p132 = pneg %p68
        $region14: #{glu_conv2d.1} parent=11 // pred_check_branch
          %134 = sbr.rel (%p132) target = $region16
        $region15: #{glu_conv2d.1} parent=11 // pred_region
          _
        $region16: #{glu_conv2d.1} parent=11 // pred_fallthru
          _
        // Predicated region
        $region17: #{glu_conv2d.1} parent=11 // pred_check
          %p135 = pneg %p89
        $region18: #{glu_conv2d.1} parent=11 // pred_check_branch
          %137 = sbr.rel (%p135) target = $region20
        $region19: #{glu_conv2d.1} parent=11 // pred_region
          _
        $region20: #{glu_conv2d.1} parent=11 // pred_fallthru
          _
      $region12: #{glu_conv2d.1} parent=5 // pred_fallthru
        _
      %p138 = scmp.lt.s32.totalorder %s9, 4
      // Predicated region
      $region21: #{glu_conv2d.1} parent=5 // pred_check
        %p139 = pneg %p138
      $region22: #{glu_conv2d.1} parent=5 // pred_check_branch
        %141 = sbr.rel (%p139) target = $region24
      $region23: #{glu_conv2d.1} parent=5 // pred_region
        // Predicated region
        $region25: #{glu_conv2d.1} parent=23 // pred_check
          %p142 = pneg %p41
        $region26: #{glu_conv2d.1} parent=23 // pred_check_branch
          %144 = sbr.rel (%p142) target = $region28
        $region27: #{glu_conv2d.1} parent=23 // pred_region
          %p145 = scmp.lt.s32.totalorder %s16, 1
          %s146 = scalar_select %p145, %s16, 1
          %s147 = smul.addr %s146, 9
          %s148 = smul.addr %s147, 4
          %s149 = scalar_lea.vmem %s0, %s148
        $region28: #{glu_conv2d.1} parent=23 // pred_fallthru
          _
      $region24: #{glu_conv2d.1} parent=5 // pred_fallthru
        _
      %p150 = scmp.le.s32.totalorder 1, %s9
      %p151 = scmp.lt.s32.totalorder %s9, 5
      %p152 = pnand %p150, %p151
      %p153 = pneg %p152
      // Predicated region
      $region29: #{glu_conv2d.1} parent=5 // pred_check
        _
      $region30: #{glu_conv2d.1} parent=5 // pred_check_branch
        %155 = sbr.rel (%p152) target = $region32
      $region31: #{glu_conv2d.1} parent=5 // pred_region
        %s156 = ssub.s32 %s9, 1
        %p157 = scmp.lt.s32.totalorder %s18, 1
        %s158 = scalar_select %p157, %s18, 1
        %s159 = smul.addr %s158, 9
        %s160 = smul.addr %s159, 4
        %s161 = scalar_lea.vmem %s0, %s160
        %p162 = pneg %p47
        %p163 = pneg %p44
        %p164 = pneg %p68
        %p165 = pneg %p65
        %p166 = pneg %p89
        %p167 = pneg %p86
        %p168 = pneg %p117
        %p169 = pneg %p114
        %s170 = sand.u32 %s104, 1
        %s171 = sand.u32 %s104, 1
        %s172 = smul.addr %s171, 32
        %s173 = scalar_lea.vmem [#allocation2], %s172
        %p174 = scmp.lt.s32.totalorder %s18, 1
        %s175 = scalar_select %p174, %s18, 1
        %s176 = smul.addr %s175, 9
        %s177 = smul.addr %s176, 4
        %s178 = scalar_lea.vmem %s0, %s177
        %s179 = smul.u32 4, %s19
        %s180 = ssub.s32 7, %s179
        %p181 = scmp.lt.s32.totalorder %s180, 4
        %s182 = scalar_select %p181, %s180, 4
        %s183 = smul.u32 128, %s182
        %s185 = smul.u32 %s19, 4
        %v186 = vld [vmem:[%s1] sm:$0xf]
        %v187 = vld [vmem:[%s1 + $0x4] sm:$0xf]
        %s188 = scalar_lea.vmem %s1, 8
        %v189 = vld [vmem:[%s188] sm:$0xf]
        %v190 = vld [vmem:[%s188 + $0x4] sm:$0xf]
        %s191 = scalar_lea.vmem %s1, 16
        %v192 = vld [vmem:[%s191] sm:$0xf]
        %v193 = vld [vmem:[%s191 + $0x4] sm:$0xf]
        %s194 = scalar_lea.vmem %s1, 24
        %v195 = vld [vmem:[%s194] sm:$0xf]
        %v196 = vld [vmem:[%s194 + $0x4] sm:$0xf]
        %v197 = vld [vmem:[%s2] sm:$0x1]
        %s198 = smul.addr %s185, 4
        %s199 = scalar_lea.vmem %s178, %s198
        %v200 = vld [vmem:[%s199] sm:$0xf]
        %v202 = vunpack.c.l.b16 %v200
        %v203 = vpack.c.b16 %v202, %v202
        %v205 = vshrl.u32 %v203, 16
        %v207 = vshll.u32 %v203, 16
        %v209 = vrot.slane %v207, 1
        %v210 = vor.u32 %v205, %v209
        %v213 = vunpack.c.l.b16 %v189
        %v214 = vunpack.c.l.b16 %v190
        %v215 = vpack.c.b16 %v214, %v213
        %vm217 = vcmask 130048
        %v219 = vsel %vm217, %v210, 0
        %221 = vmatprep.subr.bf16.mxu0 0
        %222 = vmatpush1.bf16.msra.mxu0 0
        %223 = vmatprep.subr.bf16.mxu0 0
        %224 = vmatpush1.bf16.msra.mxu0 0
        %225 = vmatprep.subr.bf16.mxu0 0
        %226 = vmatpush1.bf16.msra.mxu0 0
        %227 = vmatprep.subr.bf16.mxu0 0
        %228 = vmatpush1.bf16.msra.mxu0 0
        %229 = vmatprep.subr.bf16.mxu0 0
        %230 = vmatpush1.bf16.msra.mxu0 0
        %231 = vmatprep.subr.bf16.mxu0 0
        %232 = vmatpush1.bf16.msra.mxu0 0
        %233 = vmatprep.subr.bf16.mxu0 0
        %234 = vmatpush1.bf16.msra.mxu0 0
        %235 = vmatprep.subr.bf16.mxu0 0
        %236 = vmatpush1.bf16.msra.mxu0 %v215
        %237 = vmatprep.subr.bf16.mxu0 0
        %238 = vmatpush2.bf16.msra.mxu0 0
        %239 = vmatprep.subr.bf16.mxu0 0
        %240 = vmatpush2.bf16.msra.mxu0 0
        %241 = vmatprep.subr.bf16.mxu0 0
        %242 = vmatpush2.bf16.msra.mxu0 0
        %243 = vmatprep.subr.bf16.mxu0 0
        %244 = vmatpush2.bf16.msra.mxu0 0
        %245 = vmatprep.subr.bf16.mxu0 0
        %246 = vmatpush2.bf16.msra.mxu0 0
        %247 = vmatprep.subr.bf16.mxu0 0
        %248 = vmatpush2.bf16.msra.mxu0 0
        %249 = vmatprep.subr.bf16.mxu0 0
        %250 = vmatpush2.bf16.msra.mxu0 0
        %251 = vmatprep.subr.bf16.mxu0 0
        %252 = vmatpush2.bf16.msra.mxu0 0
        %253 = vmatprep.mubr.bf16.mxu0 0
        %254 = vmatmul.mubr.bf16.gmra.mxu0 %v219
        %v255 = vpop.f32.mrf.mxu0
        %v256 = vadd.f32 0.0, %v255
        %v257 = vpop.f32.mrf.mxu0
        %v258 = vpop.f32.mrf.mxu0
        %v259 = vpop.f32.mrf.mxu0
        %260 = vdwg.mxu0
        %v263 = vunpack.c.l.b16 %v186
        %v264 = vunpack.c.l.b16 %v187
        %v265 = vpack.c.b16 %v264, %v263
        %v268 = vsel %vm217, %v200, 0
        %270 = vmatprep.subr.bf16.mxu0 0
        %271 = vmatpush1.bf16.msra.mxu0 0
        %272 = vmatprep.subr.bf16.mxu0 0
        %273 = vmatpush1.bf16.msra.mxu0 0
        %274 = vmatprep.subr.bf16.mxu0 0
        %275 = vmatpush1.bf16.msra.mxu0 0
        %276 = vmatprep.subr.bf16.mxu0 0
        %277 = vmatpush1.bf16.msra.mxu0 0
        %278 = vmatprep.subr.bf16.mxu0 0
        %279 = vmatpush1.bf16.msra.mxu0 0
        %280 = vmatprep.subr.bf16.mxu0 0
        %281 = vmatpush1.bf16.msra.mxu0 0
        %282 = vmatprep.subr.bf16.mxu0 0
        %283 = vmatpush1.bf16.msra.mxu0 0
        %284 = vmatprep.subr.bf16.mxu0 0
        %285 = vmatpush1.bf16.msra.mxu0 %v265
        %286 = vmatprep.subr.bf16.mxu0 0
        %287 = vmatpush2.bf16.msra.mxu0 0
        %288 = vmatprep.subr.bf16.mxu0 0
        %289 = vmatpush2.bf16.msra.mxu0 0
        %290 = vmatprep.subr.bf16.mxu0 0
        %291 = vmatpush2.bf16.msra.mxu0 0
        %292 = vmatprep.subr.bf16.mxu0 0
        %293 = vmatpush2.bf16.msra.mxu0 0
        %294 = vmatprep.subr.bf16.mxu0 0
        %295 = vmatpush2.bf16.msra.mxu0 0
        %296 = vmatprep.subr.bf16.mxu0 0
        %297 = vmatpush2.bf16.msra.mxu0 0
        %298 = vmatprep.subr.bf16.mxu0 0
        %299 = vmatpush2.bf16.msra.mxu0 0
        %300 = vmatprep.subr.bf16.mxu0 0
        %301 = vmatpush2.bf16.msra.mxu0 0
        %302 = vmatprep.mubr.bf16.mxu0 0
        %303 = vmatmul.mubr.bf16.gmra.mxu0 %v268
        %v304 = vpop.f32.mrf.mxu0
        %v305 = vadd.f32 %v256, %v304
        %v306 = vpop.f32.mrf.mxu0
        %v307 = vpop.f32.mrf.mxu0
        %v308 = vpop.f32.mrf.mxu0
        %309 = vdwg.mxu0
        %s310 = sadd.s32 %s185, 1
        %s311 = smul.addr %s310, 4
        %s312 = scalar_lea.vmem %s178, %s311
        %v313 = vld [vmem:[%s312] sm:$0xf]
        %v316 = vunpack.c.l.b16 %v192
        %v317 = vunpack.c.l.b16 %v193
        %v318 = vpack.c.b16 %v317, %v316
        %v321 = vsel %vm217, %v313, 0
        %323 = vmatprep.subr.bf16.mxu0 0
        %324 = vmatpush1.bf16.msra.mxu0 0
        %325 = vmatprep.subr.bf16.mxu0 0
        %326 = vmatpush1.bf16.msra.mxu0 0
        %327 = vmatprep.subr.bf16.mxu0 0
        %328 = vmatpush1.bf16.msra.mxu0 0
        %329 = vmatprep.subr.bf16.mxu0 0
        %330 = vmatpush1.bf16.msra.mxu0 0
        %331 = vmatprep.subr.bf16.mxu0 0
        %332 = vmatpush1.bf16.msra.mxu0 0
        %333 = vmatprep.subr.bf16.mxu0 0
        %334 = vmatpush1.bf16.msra.mxu0 0
        %335 = vmatprep.subr.bf16.mxu0 0
        %336 = vmatpush1.bf16.msra.mxu0 0
        %337 = vmatprep.subr.bf16.mxu0 0
        %338 = vmatpush1.bf16.msra.mxu0 %v318
        %339 = vmatprep.subr.bf16.mxu0 0
        %340 = vmatpush2.bf16.msra.mxu0 0
        %341 = vmatprep.subr.bf16.mxu0 0
        %342 = vmatpush2.bf16.msra.mxu0 0
        %343 = vmatprep.subr.bf16.mxu0 0
        %344 = vmatpush2.bf16.msra.mxu0 0
        %345 = vmatprep.subr.bf16.mxu0 0
        %346 = vmatpush2.bf16.msra.mxu0 0
        %347 = vmatprep.subr.bf16.mxu0 0
        %348 = vmatpush2.bf16.msra.mxu0 0
        %349 = vmatprep.subr.bf16.mxu0 0
        %350 = vmatpush2.bf16.msra.mxu0 0
        %351 = vmatprep.subr.bf16.mxu0 0
        %352 = vmatpush2.bf16.msra.mxu0 0
        %353 = vmatprep.subr.bf16.mxu0 0
        %354 = vmatpush2.bf16.msra.mxu0 0
        %355 = vmatprep.mubr.bf16.mxu0 0
        %356 = vmatmul.mubr.bf16.gmra.mxu0 %v321
        %v357 = vpop.f32.mrf.mxu0
        %v358 = vadd.f32 0.0, %v357
        %v359 = vpop.f32.mrf.mxu0
        %v360 = vpop.f32.mrf.mxu0
        %v361 = vpop.f32.mrf.mxu0
        %362 = vdwg.mxu0
        %v363 = vadd.f32 %v305, %v358
        %v365 = vunpack.c.l.b16 %v313
        %v366 = vpack.c.b16 %v365, %v365
        %v368 = vshrl.u32 %v366, 16
        %v370 = vshll.u32 %v366, 16
        %v372 = vrot.slane %v370, 1
        %v373 = vor.u32 %v368, %v372
        %v376 = vunpack.c.l.b16 %v195
        %v377 = vunpack.c.l.b16 %v196
        %v378 = vpack.c.b16 %v377, %v376
        %v381 = vsel %vm217, %v373, 0
        %383 = vmatprep.subr.bf16.mxu0 0
        %384 = vmatpush1.bf16.msra.mxu0 0
        %385 = vmatprep.subr.bf16.mxu0 0
        %386 = vmatpush1.bf16.msra.mxu0 0
        %387 = vmatprep.subr.bf16.mxu0 0
        %388 = vmatpush1.bf16.msra.mxu0 0
        %389 = vmatprep.subr.bf16.mxu0 0
        %390 = vmatpush1.bf16.msra.mxu0 0
        %391 = vmatprep.subr.bf16.mxu0 0
        %392 = vmatpush1.bf16.msra.mxu0 0
        %393 = vmatprep.subr.bf16.mxu0 0
        %394 = vmatpush1.bf16.msra.mxu0 0
        %395 = vmatprep.subr.bf16.mxu0 0
        %396 = vmatpush1.bf16.msra.mxu0 0
        %397 = vmatprep.subr.bf16.mxu0 0
        %398 = vmatpush1.bf16.msra.mxu0 %v378
        %399 = vmatprep.subr.bf16.mxu0 0
        %400 = vmatpush2.bf16.msra.mxu0 0
        %401 = vmatprep.subr.bf16.mxu0 0
        %402 = vmatpush2.bf16.msra.mxu0 0
        %403 = vmatprep.subr.bf16.mxu0 0
        %404 = vmatpush2.bf16.msra.mxu0 0
        %405 = vmatprep.subr.bf16.mxu0 0
        %406 = vmatpush2.bf16.msra.mxu0 0
        %407 = vmatprep.subr.bf16.mxu0 0
        %408 = vmatpush2.bf16.msra.mxu0 0
        %409 = vmatprep.subr.bf16.mxu0 0
        %410 = vmatpush2.bf16.msra.mxu0 0
        %411 = vmatprep.subr.bf16.mxu0 0
        %412 = vmatpush2.bf16.msra.mxu0 0
        %413 = vmatprep.subr.bf16.mxu0 0
        %414 = vmatpush2.bf16.msra.mxu0 0
        %415 = vmatprep.mubr.bf16.mxu0 0
        %416 = vmatmul.mubr.bf16.gmra.mxu0 %v381
        %v417 = vpop.f32.mrf.mxu0
        %v418 = vadd.f32 0.0, %v417
        %v419 = vpop.f32.mrf.mxu0
        %v420 = vpop.f32.mrf.mxu0
        %v421 = vpop.f32.mrf.mxu0
        %422 = vdwg.mxu0
        %v423 = vadd.f32 %v363, %v418
        %v425 = vlaneseq
        %v426 = vshrl.u32 %v425, 7
        %v427 = vsub.s32 0, %v426
        %v428 = vrot.slane %v197, %v427
        %v430 = vadd.f32 %v423, %v428
        %v431 = vxor.u32 %v430, 2147483648
        %v432 = vmul.f32 %v431, 1.442695
        %v433 = vpow.pop %v432
        %v434 = vadd.f32 %v433, 1.0
        %v435 = vrcp.pop %v434
        %v436 = vmul.f32 1.0, %v435
        %438 = vrot.lane.b32.xlu0 %v436, 120
        %v439 = vpop.permute.xlu0 %438
        %v441 = vmul.f32 %v430, %v439
        %vm442 = vcmask 63488
        %443 = vst.msk [vmem:[%s173] sm:$0x7f] %vm442, %v441
        %v444 = vld [vmem:[%s312] sm:$0xf]
        %v446 = vunpack.c.l.b16 %v444
        %v447 = vpack.c.b16 %v446, %v446
        %v449 = vshrl.u32 %v447, 16
        %v451 = vshll.u32 %v447, 16
        %v453 = vrot.slane %v451, 1
        %v454 = vor.u32 %v449, %v453
        %v456 = vsel %vm217, %v454, 0
        %458 = vmatprep.subr.bf16.mxu0 0
        %459 = vmatpush1.bf16.msra.mxu0 0
        %460 = vmatprep.subr.bf16.mxu0 0
        %461 = vmatpush1.bf16.msra.mxu0 0
        %462 = vmatprep.subr.bf16.mxu0 0
        %463 = vmatpush1.bf16.msra.mxu0 0
        %464 = vmatprep.subr.bf16.mxu0 0
        %465 = vmatpush1.bf16.msra.mxu0 0
        %466 = vmatprep.subr.bf16.mxu0 0
        %467 = vmatpush1.bf16.msra.mxu0 0
        %468 = vmatprep.subr.bf16.mxu0 0
        %469 = vmatpush1.bf16.msra.mxu0 0
        %470 = vmatprep.subr.bf16.mxu0 0
        %471 = vmatpush1.bf16.msra.mxu0 0
        %472 = vmatprep.subr.bf16.mxu0 0
        %473 = vmatpush1.bf16.msra.mxu0 %v215
        %474 = vmatprep.subr.bf16.mxu0 0
        %475 = vmatpush2.bf16.msra.mxu0 0
        %476 = vmatprep.subr.bf16.mxu0 0
        %477 = vmatpush2.bf16.msra.mxu0 0
        %478 = vmatprep.subr.bf16.mxu0 0
        %479 = vmatpush2.bf16.msra.mxu0 0
        %480 = vmatprep.subr.bf16.mxu0 0
        %481 = vmatpush2.bf16.msra.mxu0 0
        %482 = vmatprep.subr.bf16.mxu0 0
        %483 = vmatpush2.bf16.msra.mxu0 0
        %484 = vmatprep.subr.bf16.mxu0 0
        %485 = vmatpush2.bf16.msra.mxu0 0
        %486 = vmatprep.subr.bf16.mxu0 0
        %487 = vmatpush2.bf16.msra.mxu0 0
        %488 = vmatprep.subr.bf16.mxu0 0
        %489 = vmatpush2.bf16.msra.mxu0 0
        %490 = vmatprep.mubr.bf16.mxu0 0
        %491 = vmatmul.mubr.bf16.gmra.mxu0 %v456
        %v492 = vpop.f32.mrf.mxu0
        %v493 = vadd.f32 0.0, %v492
        %v494 = vpop.f32.mrf.mxu0
        %v495 = vpop.f32.mrf.mxu0
        %v496 = vpop.f32.mrf.mxu0
        %497 = vdwg.mxu0
        %v499 = vsel %vm217, %v444, 0
        %501 = vmatprep.subr.bf16.mxu0 0
        %502 = vmatpush1.bf16.msra.mxu0 0
        %503 = vmatprep.subr.bf16.mxu0 0
        %504 = vmatpush1.bf16.msra.mxu0 0
        %505 = vmatprep.subr.bf16.mxu0 0
        %506 = vmatpush1.bf16.msra.mxu0 0
        %507 = vmatprep.subr.bf16.mxu0 0
        %508 = vmatpush1.bf16.msra.mxu0 0
        %509 = vmatprep.subr.bf16.mxu0 0
        %510 = vmatpush1.bf16.msra.mxu0 0
        %511 = vmatprep.subr.bf16.mxu0 0
        %512 = vmatpush1.bf16.msra.mxu0 0
        %513 = vmatprep.subr.bf16.mxu0 0
        %514 = vmatpush1.bf16.msra.mxu0 0
        %515 = vmatprep.subr.bf16.mxu0 0
        %516 = vmatpush1.bf16.msra.mxu0 %v265
        %517 = vmatprep.subr.bf16.mxu0 0
        %518 = vmatpush2.bf16.msra.mxu0 0
        %519 = vmatprep.subr.bf16.mxu0 0
        %520 = vmatpush2.bf16.msra.mxu0 0
        %521 = vmatprep.subr.bf16.mxu0 0
        %522 = vmatpush2.bf16.msra.mxu0 0
        %523 = vmatprep.subr.bf16.mxu0 0
        %524 = vmatpush2.bf16.msra.mxu0 0
        %525 = vmatprep.subr.bf16.mxu0 0
        %526 = vmatpush2.bf16.msra.mxu0 0
        %527 = vmatprep.subr.bf16.mxu0 0
        %528 = vmatpush2.bf16.msra.mxu0 0
        %529 = vmatprep.subr.bf16.mxu0 0
        %530 = vmatpush2.bf16.msra.mxu0 0
        %531 = vmatprep.subr.bf16.mxu0 0
        %532 = vmatpush2.bf16.msra.mxu0 0
        %533 = vmatprep.mubr.bf16.mxu0 0
        %534 = vmatmul.mubr.bf16.gmra.mxu0 %v499
        %v535 = vpop.f32.mrf.mxu0
        %v536 = vadd.f32 %v493, %v535
        %v537 = vpop.f32.mrf.mxu0
        %v538 = vpop.f32.mrf.mxu0
        %v539 = vpop.f32.mrf.mxu0
        %540 = vdwg.mxu0
        %s541 = sadd.s32 %s185, 2
        %s542 = smul.addr %s541, 4
        %s543 = scalar_lea.vmem %s178, %s542
        %v544 = vld [vmem:[%s543] sm:$0xf]
        %v546 = vsel %vm217, %v544, 0
        %548 = vmatprep.subr.bf16.mxu0 0
        %549 = vmatpush1.bf16.msra.mxu0 0
        %550 = vmatprep.subr.bf16.mxu0 0
        %551 = vmatpush1.bf16.msra.mxu0 0
        %552 = vmatprep.subr.bf16.mxu0 0
        %553 = vmatpush1.bf16.msra.mxu0 0
        %554 = vmatprep.subr.bf16.mxu0 0
        %555 = vmatpush1.bf16.msra.mxu0 0
        %556 = vmatprep.subr.bf16.mxu0 0
        %557 = vmatpush1.bf16.msra.mxu0 0
        %558 = vmatprep.subr.bf16.mxu0 0
        %559 = vmatpush1.bf16.msra.mxu0 0
        %560 = vmatprep.subr.bf16.mxu0 0
        %561 = vmatpush1.bf16.msra.mxu0 0
        %562 = vmatprep.subr.bf16.mxu0 0
        %563 = vmatpush1.bf16.msra.mxu0 %v318
        %564 = vmatprep.subr.bf16.mxu0 0
        %565 = vmatpush2.bf16.msra.mxu0 0
        %566 = vmatprep.subr.bf16.mxu0 0
        %567 = vmatpush2.bf16.msra.mxu0 0
        %568 = vmatprep.subr.bf16.mxu0 0
        %569 = vmatpush2.bf16.msra.mxu0 0
        %570 = vmatprep.subr.bf16.mxu0 0
        %571 = vmatpush2.bf16.msra.mxu0 0
        %572 = vmatprep.subr.bf16.mxu0 0
        %573 = vmatpush2.bf16.msra.mxu0 0
        %574 = vmatprep.subr.bf16.mxu0 0
        %575 = vmatpush2.bf16.msra.mxu0 0
        %576 = vmatprep.subr.bf16.mxu0 0
        %577 = vmatpush2.bf16.msra.mxu0 0
        %578 = vmatprep.subr.bf16.mxu0 0
        %579 = vmatpush2.bf16.msra.mxu0 0
        %580 = vmatprep.mubr.bf16.mxu0 0
        %581 = vmatmul.mubr.bf16.gmra.mxu0 %v546
        %v582 = vpop.f32.mrf.mxu0
        %v583 = vadd.f32 0.0, %v582
        %v584 = vpop.f32.mrf.mxu0
        %v585 = vpop.f32.mrf.mxu0
        %v586 = vpop.f32.mrf.mxu0
        %587 = vdwg.mxu0
        %v588 = vadd.f32 %v536, %v583
        %v590 = vunpack.c.l.b16 %v544
        %v591 = vpack.c.b16 %v590, %v590
        %v593 = vshrl.u32 %v591, 16
        %v595 = vshll.u32 %v591, 16
        %v597 = vrot.slane %v595, 1
        %v598 = vor.u32 %v593, %v597
        %v600 = vsel %vm217, %v598, 0
        %602 = vmatprep.subr.bf16.mxu0 0
        %603 = vmatpush1.bf16.msra.mxu0 0
        %604 = vmatprep.subr.bf16.mxu0 0
        %605 = vmatpush1.bf16.msra.mxu0 0
        %606 = vmatprep.subr.bf16.mxu0 0
        %607 = vmatpush1.bf16.msra.mxu0 0
        %608 = vmatprep.subr.bf16.mxu0 0
        %609 = vmatpush1.bf16.msra.mxu0 0
        %610 = vmatprep.subr.bf16.mxu0 0
        %611 = vmatpush1.bf16.msra.mxu0 0
        %612 = vmatprep.subr.bf16.mxu0 0
        %613 = vmatpush1.bf16.msra.mxu0 0
        %614 = vmatprep.subr.bf16.mxu0 0
        %615 = vmatpush1.bf16.msra.mxu0 0
        %616 = vmatprep.subr.bf16.mxu0 0
        %617 = vmatpush1.bf16.msra.mxu0 %v378
        %618 = vmatprep.subr.bf16.mxu0 0
        %619 = vmatpush2.bf16.msra.mxu0 0
        %620 = vmatprep.subr.bf16.mxu0 0
        %621 = vmatpush2.bf16.msra.mxu0 0
        %622 = vmatprep.subr.bf16.mxu0 0
        %623 = vmatpush2.bf16.msra.mxu0 0
        %624 = vmatprep.subr.bf16.mxu0 0
        %625 = vmatpush2.bf16.msra.mxu0 0
        %626 = vmatprep.subr.bf16.mxu0 0
        %627 = vmatpush2.bf16.msra.mxu0 0
        %628 = vmatprep.subr.bf16.mxu0 0
        %629 = vmatpush2.bf16.msra.mxu0 0
        %630 = vmatprep.subr.bf16.mxu0 0
        %631 = vmatpush2.bf16.msra.mxu0 0
        %632 = vmatprep.subr.bf16.mxu0 0
        %633 = vmatpush2.bf16.msra.mxu0 0
        %634 = vmatprep.mubr.bf16.mxu0 0
        %635 = vmatmul.mubr.bf16.gmra.mxu0 %v600
        %v636 = vpop.f32.mrf.mxu0
        %v637 = vadd.f32 0.0, %v636
        %v638 = vpop.f32.mrf.mxu0
        %v639 = vpop.f32.mrf.mxu0
        %v640 = vpop.f32.mrf.mxu0
        %641 = vdwg.mxu0
        %v642 = vadd.f32 %v588, %v637
        %v643 = vadd.f32 %v642, %v428
        %v644 = vxor.u32 %v643, 2147483648
        %v645 = vmul.f32 %v644, 1.442695
        %v646 = vpow.pop %v645
        %v647 = vadd.f32 %v646, 1.0
        %v648 = vrcp.pop %v647
        %v649 = vmul.f32 1.0, %v648
        %651 = vrot.lane.b32.xlu0 %v649, 120
        %v652 = vpop.permute.xlu0 %651
        %v654 = vmul.f32 %v643, %v652
        %s655 = scalar_lea.vmem %s173, 8 [#allocation2]
        %656 = vst.msk [vmem:[%s655] sm:$0x7f] %vm442, %v654
        %v657 = vld [vmem:[%s543] sm:$0xf]
        %v659 = vunpack.c.l.b16 %v657
        %v660 = vpack.c.b16 %v659, %v659
        %v662 = vshrl.u32 %v660, 16
        %v664 = vshll.u32 %v660, 16
        %v666 = vrot.slane %v664, 1
        %v667 = vor.u32 %v662, %v666
        %v669 = vsel %vm217, %v667, 0
        %671 = vmatprep.subr.bf16.mxu0 0
        %672 = vmatpush1.bf16.msra.mxu0 0
        %673 = vmatprep.subr.bf16.mxu0 0
        %674 = vmatpush1.bf16.msra.mxu0 0
        %675 = vmatprep.subr.bf16.mxu0 0
        %676 = vmatpush1.bf16.msra.mxu0 0
        %677 = vmatprep.subr.bf16.mxu0 0
        %678 = vmatpush1.bf16.msra.mxu0 0
        %679 = vmatprep.subr.bf16.mxu0 0
        %680 = vmatpush1.bf16.msra.mxu0 0
        %681 = vmatprep.subr.bf16.mxu0 0
        %682 = vmatpush1.bf16.msra.mxu0 0
        %683 = vmatprep.subr.bf16.mxu0 0
        %684 = vmatpush1.bf16.msra.mxu0 0
        %685 = vmatprep.subr.bf16.mxu0 0
        %686 = vmatpush1.bf16.msra.mxu0 %v215
        %687 = vmatprep.subr.bf16.mxu0 0
        %688 = vmatpush2.bf16.msra.mxu0 0
        %689 = vmatprep.subr.bf16.mxu0 0
        %690 = vmatpush2.bf16.msra.mxu0 0
        %691 = vmatprep.subr.bf16.mxu0 0
        %692 = vmatpush2.bf16.msra.mxu0 0
        %693 = vmatprep.subr.bf16.mxu0 0
        %694 = vmatpush2.bf16.msra.mxu0 0
        %695 = vmatprep.subr.bf16.mxu0 0
        %696 = vmatpush2.bf16.msra.mxu0 0
        %697 = vmatprep.subr.bf16.mxu0 0
        %698 = vmatpush2.bf16.msra.mxu0 0
        %699 = vmatprep.subr.bf16.mxu0 0
        %700 = vmatpush2.bf16.msra.mxu0 0
        %701 = vmatprep.subr.bf16.mxu0 0
        %702 = vmatpush2.bf16.msra.mxu0 0
        %703 = vmatprep.mubr.bf16.mxu0 0
        %704 = vmatmul.mubr.bf16.gmra.mxu0 %v669
        %v705 = vpop.f32.mrf.mxu0
        %v706 = vadd.f32 0.0, %v705
        %v707 = vpop.f32.mrf.mxu0
        %v708 = vpop.f32.mrf.mxu0
        %v709 = vpop.f32.mrf.mxu0
        %710 = vdwg.mxu0
        %v712 = vsel %vm217, %v657, 0
        %714 = vmatprep.subr.bf16.mxu0 0
        %715 = vmatpush1.bf16.msra.mxu0 0
        %716 = vmatprep.subr.bf16.mxu0 0
        %717 = vmatpush1.bf16.msra.mxu0 0
        %718 = vmatprep.subr.bf16.mxu0 0
        %719 = vmatpush1.bf16.msra.mxu0 0
        %720 = vmatprep.subr.bf16.mxu0 0
        %721 = vmatpush1.bf16.msra.mxu0 0
        %722 = vmatprep.subr.bf16.mxu0 0
        %723 = vmatpush1.bf16.msra.mxu0 0
        %724 = vmatprep.subr.bf16.mxu0 0
        %725 = vmatpush1.bf16.msra.mxu0 0
        %726 = vmatprep.subr.bf16.mxu0 0
        %727 = vmatpush1.bf16.msra.mxu0 0
        %728 = vmatprep.subr.bf16.mxu0 0
        %729 = vmatpush1.bf16.msra.mxu0 %v265
        %730 = vmatprep.subr.bf16.mxu0 0
        %731 = vmatpush2.bf16.msra.mxu0 0
        %732 = vmatprep.subr.bf16.mxu0 0
        %733 = vmatpush2.bf16.msra.mxu0 0
        %734 = vmatprep.subr.bf16.mxu0 0
        %735 = vmatpush2.bf16.msra.mxu0 0
        %736 = vmatprep.subr.bf16.mxu0 0
        %737 = vmatpush2.bf16.msra.mxu0 0
        %738 = vmatprep.subr.bf16.mxu0 0
        %739 = vmatpush2.bf16.msra.mxu0 0
        %740 = vmatprep.subr.bf16.mxu0 0
        %741 = vmatpush2.bf16.msra.mxu0 0
        %742 = vmatprep.subr.bf16.mxu0 0
        %743 = vmatpush2.bf16.msra.mxu0 0
        %744 = vmatprep.subr.bf16.mxu0 0
        %745 = vmatpush2.bf16.msra.mxu0 0
        %746 = vmatprep.mubr.bf16.mxu0 0
        %747 = vmatmul.mubr.bf16.gmra.mxu0 %v712
        %v748 = vpop.f32.mrf.mxu0
        %v749 = vadd.f32 %v706, %v748
        %v750 = vpop.f32.mrf.mxu0
        %v751 = vpop.f32.mrf.mxu0
        %v752 = vpop.f32.mrf.mxu0
        %753 = vdwg.mxu0
        %s754 = sadd.s32 %s185, 3
        %s755 = smul.addr %s754, 4
        %s756 = scalar_lea.vmem %s178, %s755
        %v757 = vld [vmem:[%s756] sm:$0xf]
        %v759 = vsel %vm217, %v757, 0
        %761 = vmatprep.subr.bf16.mxu0 0
        %762 = vmatpush1.bf16.msra.mxu0 0
        %763 = vmatprep.subr.bf16.mxu0 0
        %764 = vmatpush1.bf16.msra.mxu0 0
        %765 = vmatprep.subr.bf16.mxu0 0
        %766 = vmatpush1.bf16.msra.mxu0 0
        %767 = vmatprep.subr.bf16.mxu0 0
        %768 = vmatpush1.bf16.msra.mxu0 0
        %769 = vmatprep.subr.bf16.mxu0 0
        %770 = vmatpush1.bf16.msra.mxu0 0
        %771 = vmatprep.subr.bf16.mxu0 0
        %772 = vmatpush1.bf16.msra.mxu0 0
        %773 = vmatprep.subr.bf16.mxu0 0
        %774 = vmatpush1.bf16.msra.mxu0 0
        %775 = vmatprep.subr.bf16.mxu0 0
        %776 = vmatpush1.bf16.msra.mxu0 %v318
        %777 = vmatprep.subr.bf16.mxu0 0
        %778 = vmatpush2.bf16.msra.mxu0 0
        %779 = vmatprep.subr.bf16.mxu0 0
        %780 = vmatpush2.bf16.msra.mxu0 0
        %781 = vmatprep.subr.bf16.mxu0 0
        %782 = vmatpush2.bf16.msra.mxu0 0
        %783 = vmatprep.subr.bf16.mxu0 0
        %784 = vmatpush2.bf16.msra.mxu0 0
        %785 = vmatprep.subr.bf16.mxu0 0
        %786 = vmatpush2.bf16.msra.mxu0 0
        %787 = vmatprep.subr.bf16.mxu0 0
        %788 = vmatpush2.bf16.msra.mxu0 0
        %789 = vmatprep.subr.bf16.mxu0 0
        %790 = vmatpush2.bf16.msra.mxu0 0
        %791 = vmatprep.subr.bf16.mxu0 0
        %792 = vmatpush2.bf16.msra.mxu0 0
        %793 = vmatprep.mubr.bf16.mxu0 0
        %794 = vmatmul.mubr.bf16.gmra.mxu0 %v759
        %v795 = vpop.f32.mrf.mxu0
        %v796 = vadd.f32 0.0, %v795
        %v797 = vpop.f32.mrf.mxu0
        %v798 = vpop.f32.mrf.mxu0
        %v799 = vpop.f32.mrf.mxu0
        %800 = vdwg.mxu0
        %v801 = vadd.f32 %v749, %v796
        %v803 = vunpack.c.l.b16 %v757
        %v804 = vpack.c.b16 %v803, %v803
        %v806 = vshrl.u32 %v804, 16
        %v808 = vshll.u32 %v804, 16
        %v810 = vrot.slane %v808, 1
        %v811 = vor.u32 %v806, %v810
        %v813 = vsel %vm217, %v811, 0
        %815 = vmatprep.subr.bf16.mxu0 0
        %816 = vmatpush1.bf16.msra.mxu0 0
        %817 = vmatprep.subr.bf16.mxu0 0
        %818 = vmatpush1.bf16.msra.mxu0 0
        %819 = vmatprep.subr.bf16.mxu0 0
        %820 = vmatpush1.bf16.msra.mxu0 0
        %821 = vmatprep.subr.bf16.mxu0 0
        %822 = vmatpush1.bf16.msra.mxu0 0
        %823 = vmatprep.subr.bf16.mxu0 0
        %824 = vmatpush1.bf16.msra.mxu0 0
        %825 = vmatprep.subr.bf16.mxu0 0
        %826 = vmatpush1.bf16.msra.mxu0 0
        %827 = vmatprep.subr.bf16.mxu0 0
        %828 = vmatpush1.bf16.msra.mxu0 0
        %829 = vmatprep.subr.bf16.mxu0 0
        %830 = vmatpush1.bf16.msra.mxu0 %v378
        %831 = vmatprep.subr.bf16.mxu0 0
        %832 = vmatpush2.bf16.msra.mxu0 0
        %833 = vmatprep.subr.bf16.mxu0 0
        %834 = vmatpush2.bf16.msra.mxu0 0
        %835 = vmatprep.subr.bf16.mxu0 0
        %836 = vmatpush2.bf16.msra.mxu0 0
        %837 = vmatprep.subr.bf16.mxu0 0
        %838 = vmatpush2.bf16.msra.mxu0 0
        %839 = vmatprep.subr.bf16.mxu0 0
        %840 = vmatpush2.bf16.msra.mxu0 0
        %841 = vmatprep.subr.bf16.mxu0 0
        %842 = vmatpush2.bf16.msra.mxu0 0
        %843 = vmatprep.subr.bf16.mxu0 0
        %844 = vmatpush2.bf16.msra.mxu0 0
        %845 = vmatprep.subr.bf16.mxu0 0
        %846 = vmatpush2.bf16.msra.mxu0 0
        %847 = vmatprep.mubr.bf16.mxu0 0
        %848 = vmatmul.mubr.bf16.gmra.mxu0 %v813
        %v849 = vpop.f32.mrf.mxu0
        %v850 = vadd.f32 0.0, %v849
        %v851 = vpop.f32.mrf.mxu0
        %v852 = vpop.f32.mrf.mxu0
        %v853 = vpop.f32.mrf.mxu0
        %854 = vdwg.mxu0
        %v855 = vadd.f32 %v801, %v850
        %v856 = vadd.f32 %v855, %v428
        %v857 = vxor.u32 %v856, 2147483648
        %v858 = vmul.f32 %v857, 1.442695
        %v859 = vpow.pop %v858
        %v860 = vadd.f32 %v859, 1.0
        %v861 = vrcp.pop %v860
        %v862 = vmul.f32 1.0, %v861
        %864 = vrot.lane.b32.xlu0 %v862, 120
        %v865 = vpop.permute.xlu0 %864
        %v867 = vmul.f32 %v856, %v865
        %s868 = scalar_lea.vmem %s173, 16 [#allocation2]
        %869 = vst.msk [vmem:[%s868] sm:$0x7f] %vm442, %v867
        %v870 = vld [vmem:[%s756] sm:$0xf]
        %v872 = vunpack.c.l.b16 %v870
        %v873 = vpack.c.b16 %v872, %v872
        %v875 = vshrl.u32 %v873, 16
        %v877 = vshll.u32 %v873, 16
        %v879 = vrot.slane %v877, 1
        %v880 = vor.u32 %v875, %v879
        %v882 = vsel %vm217, %v880, 0
        %884 = vmatprep.subr.bf16.mxu0 0
        %885 = vmatpush1.bf16.msra.mxu0 0
        %886 = vmatprep.subr.bf16.mxu0 0
        %887 = vmatpush1.bf16.msra.mxu0 0
        %888 = vmatprep.subr.bf16.mxu0 0
        %889 = vmatpush1.bf16.msra.mxu0 0
        %890 = vmatprep.subr.bf16.mxu0 0
        %891 = vmatpush1.bf16.msra.mxu0 0
        %892 = vmatprep.subr.bf16.mxu0 0
        %893 = vmatpush1.bf16.msra.mxu0 0
        %894 = vmatprep.subr.bf16.mxu0 0
        %895 = vmatpush1.bf16.msra.mxu0 0
        %896 = vmatprep.subr.bf16.mxu0 0
        %897 = vmatpush1.bf16.msra.mxu0 0
        %898 = vmatprep.subr.bf16.mxu0 0
        %899 = vmatpush1.bf16.msra.mxu0 %v215
        %900 = vmatprep.subr.bf16.mxu0 0
        %901 = vmatpush2.bf16.msra.mxu0 0
        %902 = vmatprep.subr.bf16.mxu0 0
        %903 = vmatpush2.bf16.msra.mxu0 0
        %904 = vmatprep.subr.bf16.mxu0 0
        %905 = vmatpush2.bf16.msra.mxu0 0
        %906 = vmatprep.subr.bf16.mxu0 0
        %907 = vmatpush2.bf16.msra.mxu0 0
        %908 = vmatprep.subr.bf16.mxu0 0
        %909 = vmatpush2.bf16.msra.mxu0 0
        %910 = vmatprep.subr.bf16.mxu0 0
        %911 = vmatpush2.bf16.msra.mxu0 0
        %912 = vmatprep.subr.bf16.mxu0 0
        %913 = vmatpush2.bf16.msra.mxu0 0
        %914 = vmatprep.subr.bf16.mxu0 0
        %915 = vmatpush2.bf16.msra.mxu0 0
        %916 = vmatprep.mubr.bf16.mxu0 0
        %917 = vmatmul.mubr.bf16.gmra.mxu0 %v882
        %v918 = vpop.f32.mrf.mxu0
        %v919 = vadd.f32 0.0, %v918
        %v920 = vpop.f32.mrf.mxu0
        %v921 = vpop.f32.mrf.mxu0
        %v922 = vpop.f32.mrf.mxu0
        %923 = vdwg.mxu0
        %v925 = vsel %vm217, %v870, 0
        %927 = vmatprep.subr.bf16.mxu0 0
        %928 = vmatpush1.bf16.msra.mxu0 0
        %929 = vmatprep.subr.bf16.mxu0 0
        %930 = vmatpush1.bf16.msra.mxu0 0
        %931 = vmatprep.subr.bf16.mxu0 0
        %932 = vmatpush1.bf16.msra.mxu0 0
        %933 = vmatprep.subr.bf16.mxu0 0
        %934 = vmatpush1.bf16.msra.mxu0 0
        %935 = vmatprep.subr.bf16.mxu0 0
        %936 = vmatpush1.bf16.msra.mxu0 0
        %937 = vmatprep.subr.bf16.mxu0 0
        %938 = vmatpush1.bf16.msra.mxu0 0
        %939 = vmatprep.subr.bf16.mxu0 0
        %940 = vmatpush1.bf16.msra.mxu0 0
        %941 = vmatprep.subr.bf16.mxu0 0
        %942 = vmatpush1.bf16.msra.mxu0 %v265
        %943 = vmatprep.subr.bf16.mxu0 0
        %944 = vmatpush2.bf16.msra.mxu0 0
        %945 = vmatprep.subr.bf16.mxu0 0
        %946 = vmatpush2.bf16.msra.mxu0 0
        %947 = vmatprep.subr.bf16.mxu0 0
        %948 = vmatpush2.bf16.msra.mxu0 0
        %949 = vmatprep.subr.bf16.mxu0 0
        %950 = vmatpush2.bf16.msra.mxu0 0
        %951 = vmatprep.subr.bf16.mxu0 0
        %952 = vmatpush2.bf16.msra.mxu0 0
        %953 = vmatprep.subr.bf16.mxu0 0
        %954 = vmatpush2.bf16.msra.mxu0 0
        %955 = vmatprep.subr.bf16.mxu0 0
        %956 = vmatpush2.bf16.msra.mxu0 0
        %957 = vmatprep.subr.bf16.mxu0 0
        %958 = vmatpush2.bf16.msra.mxu0 0
        %959 = vmatprep.mubr.bf16.mxu0 0
        %960 = vmatmul.mubr.bf16.gmra.mxu0 %v925
        %v961 = vpop.f32.mrf.mxu0
        %v962 = vadd.f32 %v919, %v961
        %v963 = vpop.f32.mrf.mxu0
        %v964 = vpop.f32.mrf.mxu0
        %v965 = vpop.f32.mrf.mxu0
        %966 = vdwg.mxu0
        %s967 = sadd.s32 %s185, 4
        %s968 = smul.addr %s967, 4
        %s969 = scalar_lea.vmem %s178, %s968
        %v970 = vld [vmem:[%s969] sm:$0xf]
        %v972 = vsel %vm217, %v970, 0
        %974 = vmatprep.subr.bf16.mxu0 0
        %975 = vmatpush1.bf16.msra.mxu0 0
        %976 = vmatprep.subr.bf16.mxu0 0
        %977 = vmatpush1.bf16.msra.mxu0 0
        %978 = vmatprep.subr.bf16.mxu0 0
        %979 = vmatpush1.bf16.msra.mxu0 0
        %980 = vmatprep.subr.bf16.mxu0 0
        %981 = vmatpush1.bf16.msra.mxu0 0
        %982 = vmatprep.subr.bf16.mxu0 0
        %983 = vmatpush1.bf16.msra.mxu0 0
        %984 = vmatprep.subr.bf16.mxu0 0
        %985 = vmatpush1.bf16.msra.mxu0 0
        %986 = vmatprep.subr.bf16.mxu0 0
        %987 = vmatpush1.bf16.msra.mxu0 0
        %988 = vmatprep.subr.bf16.mxu0 0
        %989 = vmatpush1.bf16.msra.mxu0 %v318
        %990 = vmatprep.subr.bf16.mxu0 0
        %991 = vmatpush2.bf16.msra.mxu0 0
        %992 = vmatprep.subr.bf16.mxu0 0
        %993 = vmatpush2.bf16.msra.mxu0 0
        %994 = vmatprep.subr.bf16.mxu0 0
        %995 = vmatpush2.bf16.msra.mxu0 0
        %996 = vmatprep.subr.bf16.mxu0 0
        %997 = vmatpush2.bf16.msra.mxu0 0
        %998 = vmatprep.subr.bf16.mxu0 0
        %999 = vmatpush2.bf16.msra.mxu0 0
        %1000 = vmatprep.subr.bf16.mxu0 0
        %1001 = vmatpush2.bf16.msra.mxu0 0
        %1002 = vmatprep.subr.bf16.mxu0 0
        %1003 = vmatpush2.bf16.msra.mxu0 0
        %1004 = vmatprep.subr.bf16.mxu0 0
        %1005 = vmatpush2.bf16.msra.mxu0 0
        %1006 = vmatprep.mubr.bf16.mxu0 0
        %1007 = vmatmul.mubr.bf16.gmra.mxu0 %v972
        %v1008 = vpop.f32.mrf.mxu0
        %v1009 = vadd.f32 0.0, %v1008
        %v1010 = vpop.f32.mrf.mxu0
        %v1011 = vpop.f32.mrf.mxu0
        %v1012 = vpop.f32.mrf.mxu0
        %1013 = vdwg.mxu0
        %v1014 = vadd.f32 %v962, %v1009
        %v1016 = vunpack.c.l.b16 %v970
        %v1017 = vpack.c.b16 %v1016, %v1016
        %v1019 = vshrl.u32 %v1017, 16
        %v1021 = vshll.u32 %v1017, 16
        %v1023 = vrot.slane %v1021, 1
        %v1024 = vor.u32 %v1019, %v1023
        %v1026 = vsel %vm217, %v1024, 0
        %1028 = vmatprep.subr.bf16.mxu0 0
        %1029 = vmatpush1.bf16.msra.mxu0 0
        %1030 = vmatprep.subr.bf16.mxu0 0
        %1031 = vmatpush1.bf16.msra.mxu0 0
        %1032 = vmatprep.subr.bf16.mxu0 0
        %1033 = vmatpush1.bf16.msra.mxu0 0
        %1034 = vmatprep.subr.bf16.mxu0 0
        %1035 = vmatpush1.bf16.msra.mxu0 0
        %1036 = vmatprep.subr.bf16.mxu0 0
        %1037 = vmatpush1.bf16.msra.mxu0 0
        %1038 = vmatprep.subr.bf16.mxu0 0
        %1039 = vmatpush1.bf16.msra.mxu0 0
        %1040 = vmatprep.subr.bf16.mxu0 0
        %1041 = vmatpush1.bf16.msra.mxu0 0
        %1042 = vmatprep.subr.bf16.mxu0 0
        %1043 = vmatpush1.bf16.msra.mxu0 %v378
        %1044 = vmatprep.subr.bf16.mxu0 0
        %1045 = vmatpush2.bf16.msra.mxu0 0
        %1046 = vmatprep.subr.bf16.mxu0 0
        %1047 = vmatpush2.bf16.msra.mxu0 0
        %1048 = vmatprep.subr.bf16.mxu0 0
        %1049 = vmatpush2.bf16.msra.mxu0 0
        %1050 = vmatprep.subr.bf16.mxu0 0
        %1051 = vmatpush2.bf16.msra.mxu0 0
        %1052 = vmatprep.subr.bf16.mxu0 0
        %1053 = vmatpush2.bf16.msra.mxu0 0
        %1054 = vmatprep.subr.bf16.mxu0 0
        %1055 = vmatpush2.bf16.msra.mxu0 0
        %1056 = vmatprep.subr.bf16.mxu0 0
        %1057 = vmatpush2.bf16.msra.mxu0 0
        %1058 = vmatprep.subr.bf16.mxu0 0
        %1059 = vmatpush2.bf16.msra.mxu0 0
        %1060 = vmatprep.mubr.bf16.mxu0 0
        %1061 = vmatmul.mubr.bf16.gmra.mxu0 %v1026
        %v1062 = vpop.f32.mrf.mxu0
        %v1063 = vadd.f32 0.0, %v1062
        %v1064 = vpop.f32.mrf.mxu0
        %v1065 = vpop.f32.mrf.mxu0
        %v1066 = vpop.f32.mrf.mxu0
        %1067 = vdwg.mxu0
        %v1068 = vadd.f32 %v1014, %v1063
        %v1069 = vadd.f32 %v1068, %v428
        %v1070 = vxor.u32 %v1069, 2147483648
        %v1071 = vmul.f32 %v1070, 1.442695
        %v1072 = vpow.pop %v1071
        %v1073 = vadd.f32 %v1072, 1.0
        %v1074 = vrcp.pop %v1073
        %v1075 = vmul.f32 1.0, %v1074
        %1077 = vrot.lane.b32.xlu0 %v1075, 120
        %v1078 = vpop.permute.xlu0 %1077
        %v1080 = vmul.f32 %v1069, %v1078
        %s1081 = scalar_lea.vmem %s173, 24 [#allocation2]
        %1082 = vst.msk [vmem:[%s1081] sm:$0x7f] %vm442, %v1080
        %s1083 = sand.u32 %s104, 1
        %s1084 = sand.u32 %s104, 1
        %s1085 = smul.addr %s1084, 32
        %s1086 = scalar_lea.vmem [#allocation2], %s1085
        // Predicated region
        $region33: #{glu_conv2d.1} parent=31 // pred_check
          %p1087 = pneg %p114
        $region34: #{glu_conv2d.1} parent=31 // pred_check_branch
          %1089 = sbr.rel (%p1087) target = $region36
        $region35: #{glu_conv2d.1} parent=31 // pred_region
          %s1090 = smul.u32 4, %s19
          %s1091 = ssub.s32 7, %s1090
          %p1092 = scmp.lt.s32.totalorder %s1091, 4
          %s1093 = scalar_select %p1092, %s1091, 4
          %s1094 = smul.u32 128, %s1093
          %p1095 = scmp.ne.s32.totalorder 0, %s1094
          %s1096 = smul.addr %s18, 7
          %s1097 = sadd.s32 %s1090, %s1096
          %s1098 = smul.addr %s1097, 8
          %s1099 = scalar_lea.vmem %s3, %s1098
          // Predicated region
          $region37: #{glu_conv2d.1} parent=35 // pred_check
            %p1100 = pneg %p1095
          $region38: #{glu_conv2d.1} parent=35 // pred_check_branch
            %1102 = sbr.rel (%p1100) target = $region40
          $region39: #{glu_conv2d.1} parent=35 // pred_region
            // Predicated region
            $region41: #{glu_conv2d.1} parent=39 // pred_check
              _
            $region42: #{glu_conv2d.1} parent=39 // pred_check_branch
              %1104 = sbr.rel (0) target = $region44
            $region43: #{glu_conv2d.1} parent=39 // pred_region
              // Predicated region
              $region63: #{glu_conv2d.1} parent=43 // pred_check
                _
              $region64: #{glu_conv2d.1} parent=43 // pred_check_branch
                %1160 = sbr.rel (0) target = $region66
              $region65: #{glu_conv2d.1} parent=43 // pred_region
                %s1161 = sshrl.u32 %s1093, 2
                // While loop
                $region67: #{glu_conv2d.1} parent=65 // loop_pre_header
                  _
                $region68: #{glu_conv2d.1} parent=65 // loop_header
                  %s1163 = sphi 0, %s1165
                  %p1164 = scmp.ge.s32.totalorder %s1163, %s1161
                  %s1168 = sphi 0, %s1181
                  %s1169 = sphi %s1086, %s1184
                  %s1170 = sphi %s1099, %s1185
                $region69: #{glu_conv2d.1} parent=65 // loop_header_branch
                  %1167 = sbr.rel (%p1164) target = $region73
                $region70: #{glu_conv2d.1} parent=65 // loop_body
                  %v1171 = vld [vmem:[%s1169] sm:$0xff]
                  %1172 = vst [vmem:[%s1170] sm:$0xff] %v1171
                  %v1173 = vld [vmem:[%s1169 + $0x8] sm:$0xff]
                  %1174 = vst [vmem:[%s1170 + $0x8] sm:$0xff] %v1173
                  %v1175 = vld [vmem:[%s1169 + $0x10] sm:$0xff]
                  %1176 = vst [vmem:[%s1170 + $0x10] sm:$0xff] %v1175
                  %v1177 = vld [vmem:[%s1169 + $0x18] sm:$0xff]
                  %1178 = vst [vmem:[%s1170 + $0x18] sm:$0xff] %v1177
                  %s1179 = sadd.s32 1, %s1168
                  %p1180 = scmp.ge.s32.totalorder %s1179, %s1161
                  %s1181 = scalar_select %p1180, 0, %s1179
                  %s1182 = smul.u32 %s1181, 32
                  %s1183 = smul.u32 %s1181, 32
                  %s1184 = scalar_lea.vmem %s1086, %s1182 [#allocation2]
                  %s1185 = scalar_lea.vmem %s1099, %s1183
                $region71: #{glu_conv2d.1} parent=65 // loop_footer
                  %s1165 = sadd.s32 %s1163, 1
                $region72: #{glu_conv2d.1} parent=65 // loop_footer_branch
                  %1162 = sbr.rel target = $region68
                $region73: #{glu_conv2d.1} parent=65 // loop_exit
                  _
                %s1186 = sshrl.u32 %s1093, 2
                %s1187 = sand.u32 %s1093, 3
                %s1188 = smul.u32 %s1186, 4
                %s1189 = smul.u32 8, %s1188
                %s1190 = scalar_lea.vmem %s1086, %s1189 [#allocation2]
                %s1191 = smul.u32 8, %s1188
                %s1192 = scalar_lea.vmem %s1099, %s1191
                // While loop
                $region74: #{glu_conv2d.1} parent=65 // loop_pre_header
                  _
                $region75: #{glu_conv2d.1} parent=65 // loop_header
                  %s1194 = sphi 0, %s1196
                  %p1195 = scmp.ge.s32.totalorder %s1194, %s1187
                  %s1199 = sphi 0, %s1206
                  %s1200 = sphi %s1190, %s1209
                  %s1201 = sphi %s1192, %s1210
                $region76: #{glu_conv2d.1} parent=65 // loop_header_branch
                  %1198 = sbr.rel (%p1195) target = $region80
                $region77: #{glu_conv2d.1} parent=65 // loop_body
                  %v1202 = vld [vmem:[%s1200] sm:$0xff]
                  %1203 = vst [vmem:[%s1201] sm:$0xff] %v1202
                  %s1204 = sadd.s32 1, %s1199
                  %p1205 = scmp.ge.s32.totalorder %s1204, %s1187
                  %s1206 = scalar_select %p1205, 0, %s1204
                  %s1207 = smul.u32 %s1206, 8
                  %s1208 = smul.u32 %s1206, 8
                  %s1209 = scalar_lea.vmem %s1190, %s1207 [#allocation2]
                  %s1210 = scalar_lea.vmem %s1192, %s1208
                $region78: #{glu_conv2d.1} parent=65 // loop_footer
                  %s1196 = sadd.s32 %s1194, 1
                $region79: #{glu_conv2d.1} parent=65 // loop_footer_branch
                  %1193 = sbr.rel target = $region75
                $region80: #{glu_conv2d.1} parent=65 // loop_exit
                  _
              $region66: #{glu_conv2d.1} parent=43 // pred_fallthru
                _
              // Predicated region
              $region81: #{glu_conv2d.1} parent=43 // pred_check
                _
              $region82: #{glu_conv2d.1} parent=43 // pred_check_branch
                %1212 = sbr.rel target = $region84
              $region83: #{glu_conv2d.1} parent=43 // pred_region
                _
              $region84: #{glu_conv2d.1} parent=43 // pred_fallthru
                _
            $region44: #{glu_conv2d.1} parent=39 // pred_fallthru
              _
            // Predicated region
            $region45: #{glu_conv2d.1} parent=39 // pred_check
              _
            $region46: #{glu_conv2d.1} parent=39 // pred_check_branch
              %1106 = sbr.rel target = $region48
            $region47: #{glu_conv2d.1} parent=39 // pred_region
              %s1108 = ssub.s32 256, 1
              %s1109 = sshrl.u32 %s1093, 2
              // While loop
              $region49: #{glu_conv2d.1} parent=47 // loop_pre_header
                _
              $region50: #{glu_conv2d.1} parent=47 // loop_header
                %s1111 = sphi 0, %s1113
                %p1112 = scmp.ge.s32.totalorder %s1111, %s1109
                %s1116 = sphi 0, %s1129
                %s1117 = sphi %s1086, %s1132
                %s1118 = sphi %s1099, %s1133
              $region51: #{glu_conv2d.1} parent=47 // loop_header_branch
                %1115 = sbr.rel (%p1112) target = $region55
              $region52: #{glu_conv2d.1} parent=47 // loop_body
                %v1119 = vld [vmem:[%s1117] sm:%s1108]
                %1120 = vst [vmem:[%s1118] sm:%s1108] %v1119
                %v1121 = vld [vmem:[%s1117 + $0x8] sm:%s1108]
                %1122 = vst [vmem:[%s1118 + $0x8] sm:%s1108] %v1121
                %v1123 = vld [vmem:[%s1117 + $0x10] sm:%s1108]
                %1124 = vst [vmem:[%s1118 + $0x10] sm:%s1108] %v1123
                %v1125 = vld [vmem:[%s1117 + $0x18] sm:%s1108]
                %1126 = vst [vmem:[%s1118 + $0x18] sm:%s1108] %v1125
                %s1127 = sadd.s32 1, %s1116
                %p1128 = scmp.ge.s32.totalorder %s1127, %s1109
                %s1129 = scalar_select %p1128, 0, %s1127
                %s1130 = smul.u32 %s1129, 32
                %s1131 = smul.u32 %s1129, 32
                %s1132 = scalar_lea.vmem %s1086, %s1130 [#allocation2]
                %s1133 = scalar_lea.vmem %s1099, %s1131
              $region53: #{glu_conv2d.1} parent=47 // loop_footer
                %s1113 = sadd.s32 %s1111, 1
              $region54: #{glu_conv2d.1} parent=47 // loop_footer_branch
                %1110 = sbr.rel target = $region50
              $region55: #{glu_conv2d.1} parent=47 // loop_exit
                _
              %s1134 = sshrl.u32 %s1093, 2
              %s1135 = sand.u32 %s1093, 3
              %s1136 = smul.u32 %s1134, 4
              %s1137 = smul.u32 8, %s1136
              %s1138 = scalar_lea.vmem %s1086, %s1137 [#allocation2]
              %s1139 = smul.u32 8, %s1136
              %s1140 = scalar_lea.vmem %s1099, %s1139
              // While loop
              $region56: #{glu_conv2d.1} parent=47 // loop_pre_header
                _
              $region57: #{glu_conv2d.1} parent=47 // loop_header
                %s1142 = sphi 0, %s1144
                %p1143 = scmp.ge.s32.totalorder %s1142, %s1135
                %s1147 = sphi 0, %s1154
                %s1148 = sphi %s1138, %s1157
                %s1149 = sphi %s1140, %s1158
              $region58: #{glu_conv2d.1} parent=47 // loop_header_branch
                %1146 = sbr.rel (%p1143) target = $region62
              $region59: #{glu_conv2d.1} parent=47 // loop_body
                %v1150 = vld [vmem:[%s1148] sm:%s1108]
                %1151 = vst [vmem:[%s1149] sm:%s1108] %v1150
                %s1152 = sadd.s32 1, %s1147
                %p1153 = scmp.ge.s32.totalorder %s1152, %s1135
                %s1154 = scalar_select %p1153, 0, %s1152
                %s1155 = smul.u32 %s1154, 8
                %s1156 = smul.u32 %s1154, 8
                %s1157 = scalar_lea.vmem %s1138, %s1155 [#allocation2]
                %s1158 = scalar_lea.vmem %s1140, %s1156
              $region60: #{glu_conv2d.1} parent=47 // loop_footer
                %s1144 = sadd.s32 %s1142, 1
              $region61: #{glu_conv2d.1} parent=47 // loop_footer_branch
                %1141 = sbr.rel target = $region57
              $region62: #{glu_conv2d.1} parent=47 // loop_exit
                _
            $region48: #{glu_conv2d.1} parent=39 // pred_fallthru
              _
          $region40: #{glu_conv2d.1} parent=35 // pred_fallthru
            _
          %1213 = vnop
        $region36: #{glu_conv2d.1} parent=31 // pred_fallthru
          _
      $region32: #{glu_conv2d.1} parent=5 // pred_fallthru
        _
      %p1214 = scmp.le.s32.totalorder 2, %s9
      // Predicated region
      $region85: #{glu_conv2d.1} parent=5 // pred_check
        %p1215 = pneg %p1214
      $region86: #{glu_conv2d.1} parent=5 // pred_check_branch
        %1217 = sbr.rel (%p1215) target = $region88
      $region87: #{glu_conv2d.1} parent=5 // pred_region
        %s1218 = ssub.s32 %s9, 2
        // Predicated region
        $region89: #{glu_conv2d.1} parent=87 // pred_check
          %p1219 = pneg %p120
        $region90: #{glu_conv2d.1} parent=87 // pred_check_branch
          %1221 = sbr.rel (%p1219) target = $region92
        $region91: #{glu_conv2d.1} parent=87 // pred_region
          %s1222 = sand.u32 %s105, 1
          %s1223 = sand.u32 %s105, 1
          %s1224 = smul.addr %s1223, 32
          %s1225 = scalar_lea.vmem [#allocation2], %s1224
        $region92: #{glu_conv2d.1} parent=87 // pred_fallthru
          _
      $region88: #{glu_conv2d.1} parent=5 // pred_fallthru
        _
    $region6: #{glu_conv2d.1} parent=1 // loop_footer
      %s13 = sadd.s32 1, %s9
    $region7: #{glu_conv2d.1} parent=1 // loop_footer_branch
      %8 = sbr.rel target = $region3
    $region8: #{glu_conv2d.1} parent=1 // loop_exit
      _

</llo_original>
